<compile_context>
chip_gen: v6e
topology: v6e:2x2x1
jax: 0.10.0
libtpu: 0.0.40
codegen_flags: <defaults>
</compile_context>

<pallas_src>
import functools

import numpy as np
import jax
import jax.numpy as jnp
from jax import lax
from jax.experimental import pallas as pl
from jax.experimental.pallas import tpu as pltpu

_HIGHEST = jax.lax.Precision.HIGHEST


def scloss_kernel(x_ref, w1_hbm, g1_ref, b1_ref, w2_ref, bias2_ref,
                  g2_ref, b2_ref, loss_ref, w1_vmem, w1_sem,
                  *, num, k, weight):
    # ---- kick off the dominant DMA (w1, bf16) and overlap with x-side work --
    w1_cp = pltpu.make_async_copy(w1_hbm, w1_vmem, w1_sem)
    w1_cp.start()

    x = x_ref[...]                                            # (B, Din) f32
    bsz = x.shape[0]
    inv_b = 1.0 / bsz                                          # static float

    # Deferred F.normalize: fold the per-row 1/||x_i|| into the fc1 result
    # (scaling commutes through the matmul) instead of materializing xn.
    inv_xnorm = lax.rsqrt(
        jnp.maximum(jnp.sum(x * x, axis=1, keepdims=True), 1e-24))  # (B,1)
    x_bf = x.astype(jnp.bfloat16)

    w1_cp.wait()

    # ---- fc1: Linear(Din, H, bias=False); bf16 operands, f32 accumulate -----
    h = jnp.dot(x_bf, w1_vmem[...], preferred_element_type=jnp.float32)  # (B,H)
    h = h * inv_xnorm                     # == F.normalize(x) @ w1

    # ---- BatchNorm1d (training-mode batch stats, biased var) + ReLU ---------
    mean1 = jnp.sum(h, axis=0, keepdims=True) * inv_b          # (1, H)
    hc = h - mean1
    var1 = jnp.sum(hc * hc, axis=0, keepdims=True) * inv_b
    h = hc * (g1_ref[...] * lax.rsqrt(var1 + 1e-5)) + b1_ref[...]
    h = jnp.maximum(h, 0.0)

    # ---- fc2: Linear(H, H); bf16 operands, f32 accumulate, f32 bias ---------
    z = jnp.dot(h.astype(jnp.bfloat16), w2_ref[...],
                preferred_element_type=jnp.float32) + bias2_ref[...]

    # ---- BatchNorm1d ----------------------------------------------------------
    mean2 = jnp.sum(z, axis=0, keepdims=True) * inv_b
    zc = z - mean2
    var2 = jnp.sum(zc * zc, axis=0, keepdims=True) * inv_b
    z = zc * (g2_ref[...] * lax.rsqrt(var2 + 1e-5)) + b2_ref[...]

    # ---- final F.normalize (kept f32; feeds the distance gram) ---------------
    z = z * lax.rsqrt(jnp.maximum(jnp.sum(z * z, axis=1, keepdims=True), 1e-24))

    # ---- weighted pairwise loss ----------------------------------------------
    a = z[:num, :]             # first half            (num, H)
    c = z[num:2 * num, :]      # second (paired) half  (num, H)

    # Rows of z are unit norm, so ||a_i - c_j||^2 = 2 - 2 a_i . c_j.
    # Keep this gram f32 / HIGHEST: it is cancellation-sensitive for
    # near-identical pairs and costs ~nothing at (num,H)x(H,num).
    gram = lax.dot_general(a, c, (((1,), (1,)), ((), ())),
                           precision=_HIGHEST,
                           preferred_element_type=jnp.float32)     # (num, num)
    d = jnp.sqrt(jnp.maximum(2.0 - 2.0 * gram, 0.0))

    # Pair-weight matrix built in-kernel (static k/num/weight): the PyTorch
    # double loop hits column (i//k)*k + j, so the "weight" entry is exactly
    # the diagonal and the off-weight fills the rest of the k x k block.
    rows = lax.broadcasted_iota(jnp.int32, (num, num), 0)
    cols = lax.broadcasted_iota(jnp.int32, (num, num), 1)

    def _in_block(b):
        lo, hi = b * k, (b + 1) * k
        return (rows >= lo) & (rows < hi) & (cols >= lo) & (cols < hi)

    same_block = _in_block(0)
    for b in range(1, num // k):            # tiny static loop
        same_block = same_block | _in_block(b)

    off_w = (1.0 - weight) / (k - 1) if k > 1 else 0.0
    pw = jnp.where(rows == cols, jnp.float32(weight),
                   jnp.where(same_block, jnp.float32(off_w), jnp.float32(0.0)))

    loss_ref[0, 0] = jnp.sum(d * pw) * (1.0 / num)


def sc_loss(x, label1, params, *, num_mod=2, weight=0.55):
    """Pallas TPU implementation of SCLoss.forward. Returns a scalar f32 loss."""
    w1, g1, b1, w2, bias2, g2, b2 = params
    x = x.astype(jnp.float32)
    batch, din = x.shape
    hdim = w1.shape[1]

    # TODO(synk): label1.unique() is data-dependent; it only determines the
    # static pairing constant k, so it is resolved host-side (like PyTorch's
    # python-int k) and baked into the kernel (recompilation hazard if the
    # label composition changes).
    label_num = int(np.unique(np.asarray(label1)).size)
    k = batch // label_num
    num = batch // num_mod
    assert batch % num_mod == 0 and num % k == 0, "unsupported batch layout"

    # bf16 copies of the matmul operands (in a real training loop cache these
    # across steps instead of converting per call).
    w1_bf = w1.astype(jnp.bfloat16)
    w2_bf = w2.astype(jnp.bfloat16)

    cost = pl.CostEstimate(
        flops=2 * batch * din * hdim + 2 * batch * hdim * hdim + 2 * num * num * hdim,
        transcendentals=2 * batch + 2 * hdim + num * num,
        bytes_accessed=(x.size * 4 + w1_bf.size * 2 + w2_bf.size * 2
                        + 5 * hdim * 4 + 4),
    )

    kernel = functools.partial(scloss_kernel, num=num, k=k, weight=float(weight))
    vmem = pl.BlockSpec(memory_space=pltpu.MemorySpace.VMEM)
    loss = pl.pallas_call(
        kernel,
        out_shape=jax.ShapeDtypeStruct((1, 1), jnp.float32),
        in_specs=[vmem,                                   # x
                  pl.BlockSpec(memory_space=pl.ANY),      # w1 (manual DMA)
                  vmem, vmem,                             # BN1 gamma/beta
                  vmem, vmem,                             # fc2 W / bias
                  vmem, vmem],                            # BN2 gamma/beta
        out_specs=pl.BlockSpec(memory_space=pltpu.MemorySpace.SMEM),
        scratch_shapes=[pltpu.VMEM((din, hdim), jnp.bfloat16),
                        pltpu.SemaphoreType.DMA],
        cost_estimate=cost,
    )(x, w1_bf, g1, b1, w2_bf, bias2, g2, b2)
    return loss[0, 0]


def _reference(x, label1, params, *, num_mod=2, weight=0.55):
    """Pure-JAX f32 mirror of PyTorch SCLoss.forward (training-mode BN)."""
    w1, g1, b1, w2, bias2, g2, b2 = params
    x = x.astype(jnp.float32)
    label_num = int(np.unique(np.asarray(label1)).size)
    k = x.shape[0] // label_num

    def l2n(v):
        n = jnp.sqrt(jnp.sum(v * v, axis=1, keepdims=True))
        return v / jnp.maximum(n, 1e-12)

    def bn(v, g, b_):
        m = jnp.mean(v, axis=0, keepdims=True)
        var = jnp.mean((v - m) ** 2, axis=0, keepdims=True)
        return (v - m) / jnp.sqrt(var + 1e-5) * g + b_

    h = jnp.dot(l2n(x), w1, precision=_HIGHEST)
    h = jnp.maximum(bn(h, g1, b1), 0.0)
    z = jnp.dot(h, w2, precision=_HIGHEST) + bias2
    z = l2n(bn(z, g2, b2))

    num = x.shape[0] // num_mod
    loss = jnp.float32(0.0)
    for i in range(num):
        index = i // k
        for j in range(k):
            d = jnp.sqrt(jnp.sum((z[i] - z[num + index * k + j]) ** 2))
            if i % k == j:
                loss = loss + d * weight
            else:
                loss = loss + d * (1.0 - weight) / (k - 1)
    return loss / num


if __name__ == "__main__":
    B, DIN, H = 16, 2048, 256          # 4 identities x 2 samples x 2 modalities
    key = jax.random.PRNGKey(0)
    ks = jax.random.split(key, 8)

    x = jax.random.normal(ks[0], (B, DIN), dtype=jnp.float32)
    label1 = jnp.array([0, 0, 1, 1, 2, 2, 3, 3] * 2, dtype=jnp.int32)

    params = (
        0.02 * jax.random.normal(ks[1], (DIN, H), dtype=jnp.float32),     # fc1 W (pre-transposed)
        1.0 + 0.1 * jax.random.normal(ks[2], (1, H), dtype=jnp.float32),  # BN1 gamma
        0.1 * jax.random.normal(ks[3], (1, H), dtype=jnp.float32),        # BN1 beta
        0.05 * jax.random.normal(ks[4], (H, H), dtype=jnp.float32),       # fc2 W (pre-transposed)
        0.1 * jax.random.normal(ks[5], (1, H), dtype=jnp.float32),        # fc2 bias
        1.0 + 0.1 * jax.random.normal(ks[6], (1, H), dtype=jnp.float32),  # BN2 gamma
        0.1 * jax.random.normal(ks[7], (1, H), dtype=jnp.float32),        # BN2 beta
    )

    loss = sc_loss(x, label1, params, num_mod=2, weight=0.55)
    jax.block_until_ready(loss)

    ref = _reference(x, label1, params, num_mod=2, weight=0.55)
    assert jnp.allclose(loss, ref, rtol=2e-3, atol=2e-3), (float(loss), float(ref))
    print("KERNEL_OK")
</pallas_src>

<mosaic_0001>
module attributes {stable_mosaic.version = 11 : i64} {
  func.func @scloss_kernel(%arg0: memref<16x2048xf32, #tpu.memory_space<vmem>>, %arg1: memref<2048x256xbf16, #tpu.memory_space<any>>, %arg2: memref<1x256xf32, #tpu.memory_space<vmem>>, %arg3: memref<1x256xf32, #tpu.memory_space<vmem>>, %arg4: memref<256x256xbf16, #tpu.memory_space<vmem>>, %arg5: memref<1x256xf32, #tpu.memory_space<vmem>>, %arg6: memref<1x256xf32, #tpu.memory_space<vmem>>, %arg7: memref<1x256xf32, #tpu.memory_space<vmem>>, %arg8: memref<1x1xf32, #tpu.memory_space<smem>>, %arg9: memref<2048x256xbf16, #tpu.memory_space<vmem>>, %arg10: memref<!tpu.dma_semaphore, #tpu.memory_space<semaphore_mem>>) attributes {dimension_semantics = [], scalar_prefetch = 0 : i64, scratch_operands = 2 : i64, tpu.core_type = #tpu.core_type<tc>} {
    tpu.enqueue_dma source(%arg1 : memref<2048x256xbf16, #tpu.memory_space<any>>) target(%arg9 : memref<2048x256xbf16, #tpu.memory_space<vmem>>) target_semaphore(%arg10 : memref<!tpu.dma_semaphore, #tpu.memory_space<semaphore_mem>>)
    %c0 = arith.constant 0 : index
    %c0_0 = arith.constant 0 : index
    %0 = vector.load %arg0[%c0, %c0_0] : memref<16x2048xf32, #tpu.memory_space<vmem>>, vector<16x2048xf32>
    %1 = arith.mulf %0, %0 : vector<16x2048xf32>
    %cst = arith.constant dense<0.000000e+00> : vector<16xf32>
    %2 = vector.multi_reduction <add>, %1, %cst [1] : vector<16x2048xf32> to vector<16xf32>
    %3 = vector.shape_cast %2 : vector<16xf32> to vector<16x1xf32>
    %cst_1 = arith.constant 1.000000e-24 : f32
    %4 = vector.broadcast %cst_1 : f32 to vector<16x1xf32>
    %5 = arith.maximumf %3, %4 : vector<16x1xf32>
    %6 = math.rsqrt %5 : vector<16x1xf32>
    %7 = arith.truncf %0 : vector<16x2048xf32> to vector<16x2048xbf16>
    tpu.wait_dma2 semaphore(%arg10 : memref<!tpu.dma_semaphore, #tpu.memory_space<semaphore_mem>>) src(%arg1 : memref<2048x256xbf16, #tpu.memory_space<any>>) dst(%arg9 : memref<2048x256xbf16, #tpu.memory_space<vmem>>)
    %c0_2 = arith.constant 0 : index
    %c0_3 = arith.constant 0 : index
    %8 = vector.load %arg9[%c0_2, %c0_3] : memref<2048x256xbf16, #tpu.memory_space<vmem>>, vector<2048x256xbf16>
    %cst_4 = arith.constant dense<0.000000e+00> : vector<16x256xf32>
    %9 = tpu.matmul %7, %8, %cst_4 {dimension_numbers = #tpu.dot_dimension_numbers<[1], [0], [0], [1], [0, 0, 1, 1], [], []>} : vector<16x2048xbf16>, vector<2048x256xbf16>, vector<16x256xf32> -> vector<16x256xf32>
    %10 = vector.broadcast %6 : vector<16x1xf32> to vector<16x256xf32>
    %11 = arith.mulf %9, %10 : vector<16x256xf32>
    %cst_5 = arith.constant dense<0.000000e+00> : vector<256xf32>
    %12 = vector.multi_reduction <add>, %11, %cst_5 [0] : vector<16x256xf32> to vector<256xf32>
    %13 = vector.shape_cast %12 : vector<256xf32> to vector<1x256xf32>
    %cst_6 = arith.constant 6.250000e-02 : f32
    %14 = vector.broadcast %cst_6 : f32 to vector<1x256xf32>
    %15 = arith.mulf %13, %14 : vector<1x256xf32>
    %16 = vector.broadcast %15 : vector<1x256xf32> to vector<16x256xf32>
    %17 = arith.subf %11, %16 : vector<16x256xf32>
    %18 = arith.mulf %17, %17 : vector<16x256xf32>
    %cst_7 = arith.constant dense<0.000000e+00> : vector<256xf32>
    %19 = vector.multi_reduction <add>, %18, %cst_7 [0] : vector<16x256xf32> to vector<256xf32>
    %20 = vector.shape_cast %19 : vector<256xf32> to vector<1x256xf32>
    %cst_8 = arith.constant 6.250000e-02 : f32
    %21 = vector.broadcast %cst_8 : f32 to vector<1x256xf32>
    %22 = arith.mulf %20, %21 : vector<1x256xf32>
    %c0_9 = arith.constant 0 : index
    %c0_10 = arith.constant 0 : index
    %23 = vector.load %arg2[%c0_9, %c0_10] : memref<1x256xf32, #tpu.memory_space<vmem>>, vector<1x256xf32>
    %cst_11 = arith.constant 9.99999974E-6 : f32
    %24 = vector.broadcast %cst_11 : f32 to vector<1x256xf32>
    %25 = arith.addf %22, %24 : vector<1x256xf32>
    %26 = math.rsqrt %25 : vector<1x256xf32>
    %27 = arith.mulf %23, %26 : vector<1x256xf32>
    %28 = vector.broadcast %27 : vector<1x256xf32> to vector<16x256xf32>
    %29 = arith.mulf %17, %28 : vector<16x256xf32>
    %c0_12 = arith.constant 0 : index
    %c0_13 = arith.constant 0 : index
    %30 = vector.load %arg3[%c0_12, %c0_13] : memref<1x256xf32, #tpu.memory_space<vmem>>, vector<1x256xf32>
    %31 = vector.broadcast %30 : vector<1x256xf32> to vector<16x256xf32>
    %32 = arith.addf %29, %31 : vector<16x256xf32>
    %cst_14 = arith.constant 0.000000e+00 : f32
    %33 = vector.broadcast %cst_14 : f32 to vector<16x256xf32>
    %34 = arith.maximumf %32, %33 : vector<16x256xf32>
    %35 = arith.truncf %34 : vector<16x256xf32> to vector<16x256xbf16>
    %c0_15 = arith.constant 0 : index
    %c0_16 = arith.constant 0 : index
    %36 = vector.load %arg4[%c0_15, %c0_16] : memref<256x256xbf16, #tpu.memory_space<vmem>>, vector<256x256xbf16>
    %cst_17 = arith.constant dense<0.000000e+00> : vector<16x256xf32>
    %37 = tpu.matmul %35, %36, %cst_17 {dimension_numbers = #tpu.dot_dimension_numbers<[1], [0], [0], [1], [0, 0, 1, 1], [], []>} : vector<16x256xbf16>, vector<256x256xbf16>, vector<16x256xf32> -> vector<16x256xf32>
    %c0_18 = arith.constant 0 : index
    %c0_19 = arith.constant 0 : index
    %38 = vector.load %arg5[%c0_18, %c0_19] : memref<1x256xf32, #tpu.memory_space<vmem>>, vector<1x256xf32>
    %39 = vector.broadcast %38 : vector<1x256xf32> to vector<16x256xf32>
    %40 = arith.addf %37, %39 : vector<16x256xf32>
    %cst_20 = arith.constant dense<0.000000e+00> : vector<256xf32>
    %41 = vector.multi_reduction <add>, %40, %cst_20 [0] : vector<16x256xf32> to vector<256xf32>
    %42 = vector.shape_cast %41 : vector<256xf32> to vector<1x256xf32>
    %cst_21 = arith.constant 6.250000e-02 : f32
    %43 = vector.broadcast %cst_21 : f32 to vector<1x256xf32>
    %44 = arith.mulf %42, %43 : vector<1x256xf32>
    %45 = vector.broadcast %44 : vector<1x256xf32> to vector<16x256xf32>
    %46 = arith.subf %40, %45 : vector<16x256xf32>
    %47 = arith.mulf %46, %46 : vector<16x256xf32>
    %cst_22 = arith.constant dense<0.000000e+00> : vector<256xf32>
    %48 = vector.multi_reduction <add>, %47, %cst_22 [0] : vector<16x256xf32> to vector<256xf32>
    %49 = vector.shape_cast %48 : vector<256xf32> to vector<1x256xf32>
    %cst_23 = arith.constant 6.250000e-02 : f32
    %50 = vector.broadcast %cst_23 : f32 to vector<1x256xf32>
    %51 = arith.mulf %49, %50 : vector<1x256xf32>
    %c0_24 = arith.constant 0 : index
    %c0_25 = arith.constant 0 : index
    %52 = vector.load %arg6[%c0_24, %c0_25] : memref<1x256xf32, #tpu.memory_space<vmem>>, vector<1x256xf32>
    %cst_26 = arith.constant 9.99999974E-6 : f32
    %53 = vector.broadcast %cst_26 : f32 to vector<1x256xf32>
    %54 = arith.addf %51, %53 : vector<1x256xf32>
    %55 = math.rsqrt %54 : vector<1x256xf32>
    %56 = arith.mulf %52, %55 : vector<1x256xf32>
    %57 = vector.broadcast %56 : vector<1x256xf32> to vector<16x256xf32>
    %58 = arith.mulf %46, %57 : vector<16x256xf32>
    %c0_27 = arith.constant 0 : index
    %c0_28 = arith.constant 0 : index
    %59 = vector.load %arg7[%c0_27, %c0_28] : memref<1x256xf32, #tpu.memory_space<vmem>>, vector<1x256xf32>
    %60 = vector.broadcast %59 : vector<1x256xf32> to vector<16x256xf32>
    %61 = arith.addf %58, %60 : vector<16x256xf32>
    %62 = arith.mulf %61, %61 : vector<16x256xf32>
    %cst_29 = arith.constant dense<0.000000e+00> : vector<16xf32>
    %63 = vector.multi_reduction <add>, %62, %cst_29 [1] : vector<16x256xf32> to vector<16xf32>
    %64 = vector.shape_cast %63 : vector<16xf32> to vector<16x1xf32>
    %cst_30 = arith.constant 1.000000e-24 : f32
    %65 = vector.broadcast %cst_30 : f32 to vector<16x1xf32>
    %66 = arith.maximumf %64, %65 : vector<16x1xf32>
    %67 = math.rsqrt %66 : vector<16x1xf32>
    %68 = vector.broadcast %67 : vector<16x1xf32> to vector<16x256xf32>
    %69 = arith.mulf %61, %68 : vector<16x256xf32>
    %70 = vector.extract_strided_slice %69 {offsets = [0, 0], sizes = [8, 256], strides = [1, 1]} : vector<16x256xf32> to vector<8x256xf32>
    %71 = vector.extract_strided_slice %69 {offsets = [8, 0], sizes = [8, 256], strides = [1, 1]} : vector<16x256xf32> to vector<8x256xf32>
    %cst_31 = arith.constant dense<0.000000e+00> : vector<8x8xf32>
    %72 = tpu.matmul %70, %71, %cst_31 {dimension_numbers = #tpu.dot_dimension_numbers<[1], [1], [0], [0], [0, 0, 1, 0], [], []>, precision = #tpu.contract_precision<fp32>} : vector<8x256xf32>, vector<8x256xf32>, vector<8x8xf32> -> vector<8x8xf32>
    %cst_32 = arith.constant 2.000000e+00 : f32
    %73 = vector.broadcast %cst_32 : f32 to vector<8x8xf32>
    %74 = arith.mulf %73, %72 : vector<8x8xf32>
    %cst_33 = arith.constant 2.000000e+00 : f32
    %75 = vector.broadcast %cst_33 : f32 to vector<8x8xf32>
    %76 = arith.subf %75, %74 : vector<8x8xf32>
    %cst_34 = arith.constant 0.000000e+00 : f32
    %77 = vector.broadcast %cst_34 : f32 to vector<8x8xf32>
    %78 = arith.maximumf %76, %77 : vector<8x8xf32>
    %79 = math.sqrt %78 : vector<8x8xf32>
    %80 = tpu.iota {dimensions = array<i32: 0>} : vector<8x8xi32>
    %81 = tpu.iota {dimensions = array<i32: 1>} : vector<8x8xi32>
    %c0_i32 = arith.constant 0 : i32
    %82 = vector.broadcast %c0_i32 : i32 to vector<8x8xi32>
    %83 = arith.cmpi sge, %80, %82 : vector<8x8xi32>
    %c4_i32 = arith.constant 4 : i32
    %84 = vector.broadcast %c4_i32 : i32 to vector<8x8xi32>
    %85 = arith.cmpi slt, %80, %84 : vector<8x8xi32>
    %86 = arith.andi %83, %85 : vector<8x8xi1>
    %c0_i32_35 = arith.constant 0 : i32
    %87 = vector.broadcast %c0_i32_35 : i32 to vector<8x8xi32>
    %88 = arith.cmpi sge, %81, %87 : vector<8x8xi32>
    %89 = arith.andi %86, %88 : vector<8x8xi1>
    %c4_i32_36 = arith.constant 4 : i32
    %90 = vector.broadcast %c4_i32_36 : i32 to vector<8x8xi32>
    %91 = arith.cmpi slt, %81, %90 : vector<8x8xi32>
    %92 = arith.andi %89, %91 : vector<8x8xi1>
    %c4_i32_37 = arith.constant 4 : i32
    %93 = vector.broadcast %c4_i32_37 : i32 to vector<8x8xi32>
    %94 = arith.cmpi sge, %80, %93 : vector<8x8xi32>
    %c8_i32 = arith.constant 8 : i32
    %95 = vector.broadcast %c8_i32 : i32 to vector<8x8xi32>
    %96 = arith.cmpi slt, %80, %95 : vector<8x8xi32>
    %97 = arith.andi %94, %96 : vector<8x8xi1>
    %c4_i32_38 = arith.constant 4 : i32
    %98 = vector.broadcast %c4_i32_38 : i32 to vector<8x8xi32>
    %99 = arith.cmpi sge, %81, %98 : vector<8x8xi32>
    %100 = arith.andi %97, %99 : vector<8x8xi1>
    %c8_i32_39 = arith.constant 8 : i32
    %101 = vector.broadcast %c8_i32_39 : i32 to vector<8x8xi32>
    %102 = arith.cmpi slt, %81, %101 : vector<8x8xi32>
    %103 = arith.andi %100, %102 : vector<8x8xi1>
    %104 = arith.ori %92, %103 : vector<8x8xi1>
    %105 = arith.cmpi eq, %80, %81 : vector<8x8xi32>
    %cst_40 = arith.constant 1.500000e-01 : f32
    %cst_41 = arith.constant 0.000000e+00 : f32
    %106 = vector.broadcast %cst_40 : f32 to vector<8x8xf32>
    %107 = vector.broadcast %cst_41 : f32 to vector<8x8xf32>
    %108 = arith.select %104, %106, %107 : vector<8x8xi1>, vector<8x8xf32>
    %cst_42 = arith.constant 5.500000e-01 : f32
    %109 = vector.broadcast %cst_42 : f32 to vector<8x8xf32>
    %110 = arith.select %105, %109, %108 : vector<8x8xi1>, vector<8x8xf32>
    %111 = arith.mulf %79, %110 : vector<8x8xf32>
    %112 = vector.shape_cast %111 : vector<8x8xf32> to vector<1x8x8xf32>
    %cst_43 = arith.constant dense<0.000000e+00> : vector<1xf32>
    %113 = vector.multi_reduction <add>, %112, %cst_43 [1, 2] : vector<1x8x8xf32> to vector<1xf32>
    %114 = vector.shape_cast %113 : vector<1xf32> to vector<1x1x1xf32>
    %115 = vector.extract %114[0, 0, 0] : f32 from vector<1x1x1xf32>
    %cst_44 = arith.constant 1.250000e-01 : f32
    %116 = arith.mulf %115, %cst_44 : f32
    %c0_45 = arith.constant 0 : index
    %c0_46 = arith.constant 0 : index
    %117 = memref.load %arg8[%c0_45, %c0_46] : memref<1x1xf32, #tpu.memory_space<smem>>
    memref.store %116, %arg8[%c0_45, %c0_46] : memref<1x1xf32, #tpu.memory_space<smem>>
    return
  }
}

</mosaic_0001>

<llo_original>
// kernel: tpu_custom_call.1
$region0: #{tpu_custom_call.1}
  #allocation0 [shape = 'u32[]', space=smem, size = 0x4, offset = 0x4, fixed_abs, tag = 'smem constant byte address 0x4 - core index']
  #allocation1 [shape = 'u32[144,128]{1,0:T(1,128)}', space=vmem, size = 0x12000, scoped, tag = 'internal scratch']
  #allocation2 [shape = 'bf16[2048,256]{1,0:T(8,128)(2,1)}', space=vmem, size = 0x100000, scoped, tag = 'scratch operand']
  #allocation3 [shape = 's32[1]{0}', space=sflag, size = 0x4, scoped, tag = 'scratch operand']
  #allocation10 [shape = 's32[]', space=sflag, size = 0x4, offset = 0, fixed_abs, tag = 'sflag constant byte address 0x0 - dummy sync flag']
  #allocation11 [shape = 's32[]', space=sflag, size = 0x4, offset = 0, fixed_abs, tag = 'sflag constant byte address 0x0 - dummy sync flag']
  #allocation12 [shape = 'u32[]', space=smem, size = 0x4, offset = 0x44, fixed_abs, tag = 'smem constant byte address 0x44 - assertion arg 0']
  #allocation13 [shape = 'u32[]', space=smem, size = 0x4, offset = 0x48, fixed_abs, tag = 'smem constant byte address 0x48 - assertion arg 1']
  %s0 = inlined_call_operand.hbm [shape: f32[16,2048], index: 0, kind: input, shape index: {}]
  %s1 = inlined_call_operand.hbm [shape: bf16[2048,256], index: 1, kind: input, shape index: {}]
  %s2 = inlined_call_operand.vmem [shape: f32[1,256], index: 2, kind: input, shape index: {}]
  %s3 = inlined_call_operand.vmem [shape: f32[1,256], index: 3, kind: input, shape index: {}]
  %s4 = inlined_call_operand.hbm [shape: bf16[256,256], index: 4, kind: input, shape index: {}]
  %s5 = inlined_call_operand.vmem [shape: f32[1,256], index: 5, kind: input, shape index: {}]
  %s6 = inlined_call_operand.vmem [shape: f32[1,256], index: 6, kind: input, shape index: {}]
  %s7 = inlined_call_operand.vmem [shape: f32[1,256], index: 7, kind: input, shape index: {}]
  %s8 = inlined_call_operand.hbm [shape: f32[1,1], index: 8, kind: output, shape index: {}]
  %s9 = sld [smem:[#allocation0]]
  $region50: #{tpu_custom_call.1} parent=0
    _
  %s11 = ssub.s32 1, %s9
  %s12 = scalar_select 0, %s11, %s9
  $region1: #{tpu_custom_call.1} parent=0
    #allocation4 [shape = 'u8[131072]{0}', space=vmem, size = 0x20000, scoped, tag = 'input window, operand 0, single buffered']
    #allocation5 [shape = 's32[1]{0}', space=sflag, size = 0x4, scoped, tag = 'scoped memory for tpu_custom_call.1']
    #allocation6 [shape = 's32[1]{0}', space=sflag, size = 0x4, scoped, tag = 'scoped memory for tpu_custom_call.1']
    #allocation7 [shape = 'u8[131072]{0}', space=vmem, size = 0x20000, scoped, tag = 'input window, operand 4, single buffered']
    #allocation8 [shape = 's32[1]{0}', space=sflag, size = 0x4, scoped, tag = 'scoped memory for tpu_custom_call.1']
    #allocation9 [shape = 'u8[512]{0}', space=smem, size = 0x200, scoped, tag = 'output window, operand 0, single buffered']
    %13 = vsyncpa [#allocation5], 0
    %14 = vsyncpa [#allocation8], 0
    %15 = vsyncpa [#allocation6], 0
    // Predicated region
    $region2: #{tpu_custom_call.1} parent=1 // pred_check
      _
    $region3: #{tpu_custom_call.1} parent=1 // pred_check_branch
      %17 = sbr.rel (0) target = $region5
    $region4: #{tpu_custom_call.1} parent=1 // pred_region
      %s19 = ssub.s32 4096, 4096
      %20 = vsyncadd [#allocation5], %s19
      %s21 = sshll.u32 [#allocation4], 4
      %s22 = int_to_ptr.vmem [resolvable:$true] %s21
      %27 = dma.hbm_to_vmem [thread:$0]  %s0, 4096, %s22, [#allocation5], 2048, 2048, 128
    $region5: #{tpu_custom_call.1} parent=1 // pred_fallthru
      _
    // Predicated region
    $region6: #{tpu_custom_call.1} parent=1 // pred_check
      _
    $region7: #{tpu_custom_call.1} parent=1 // pred_check_branch
      %29 = sbr.rel (0) target = $region9
    $region8: #{tpu_custom_call.1} parent=1 // pred_region
      _
    $region9: #{tpu_custom_call.1} parent=1 // pred_fallthru
      _
    // Predicated region
    $region10: #{tpu_custom_call.1} parent=1 // pred_check
      _
    $region11: #{tpu_custom_call.1} parent=1 // pred_check_branch
      %31 = sbr.rel (0) target = $region13
    $region12: #{tpu_custom_call.1} parent=1 // pred_region
      _
    $region13: #{tpu_custom_call.1} parent=1 // pred_fallthru
      _
    // Predicated region
    $region14: #{tpu_custom_call.1} parent=1 // pred_check
      _
    $region15: #{tpu_custom_call.1} parent=1 // pred_check_branch
      %33 = sbr.rel (0) target = $region17
    $region16: #{tpu_custom_call.1} parent=1 // pred_region
      %s35 = ssub.s32 4096, 4096
      %36 = vsyncadd [#allocation8], %s35
      %s37 = sshll.u32 [#allocation7], 4
      %s38 = int_to_ptr.vmem [resolvable:$true] %s37
      %43 = dma.hbm_to_vmem [thread:$0]  %s4, 4096, %s38, [#allocation8], 128, 128, 8
    $region17: #{tpu_custom_call.1} parent=1 // pred_fallthru
      _
    // Predicated region
    $region18: #{tpu_custom_call.1} parent=1 // pred_check
      _
    $region19: #{tpu_custom_call.1} parent=1 // pred_check_branch
      %45 = sbr.rel (0) target = $region21
    $region20: #{tpu_custom_call.1} parent=1 // pred_region
      _
    $region21: #{tpu_custom_call.1} parent=1 // pred_fallthru
      _
    // Predicated region
    $region22: #{tpu_custom_call.1} parent=1 // pred_check
      _
    $region23: #{tpu_custom_call.1} parent=1 // pred_check_branch
      %47 = sbr.rel (0) target = $region25
    $region24: #{tpu_custom_call.1} parent=1 // pred_region
      _
    $region25: #{tpu_custom_call.1} parent=1 // pred_fallthru
      _
    // Predicated region
    $region26: #{tpu_custom_call.1} parent=1 // pred_check
      _
    $region27: #{tpu_custom_call.1} parent=1 // pred_check_branch
      %49 = sbr.rel (0) target = $region29
    $region28: #{tpu_custom_call.1} parent=1 // pred_region
      _
    $region29: #{tpu_custom_call.1} parent=1 // pred_fallthru
      _
    // Predicated region
    $region30: #{tpu_custom_call.1} parent=1 // pred_check
      _
    $region31: #{tpu_custom_call.1} parent=1 // pred_check_branch
      %51 = sbr.rel (0) target = $region33
    $region32: #{tpu_custom_call.1} parent=1 // pred_region
      %52 = dma.done [#allocation5], 4096
    $region33: #{tpu_custom_call.1} parent=1 // pred_fallthru
      _
    // Predicated region
    $region34: #{tpu_custom_call.1} parent=1 // pred_check
      _
    $region35: #{tpu_custom_call.1} parent=1 // pred_check_branch
      %54 = sbr.rel (0) target = $region37
    $region36: #{tpu_custom_call.1} parent=1 // pred_region
      %55 = dma.done [#allocation8], 4096
    $region37: #{tpu_custom_call.1} parent=1 // pred_fallthru
      _
    // Predicated region
    $region38: #{tpu_custom_call.1} parent=1 // pred_check
      _
    $region39: #{tpu_custom_call.1} parent=1 // pred_check_branch
      %57 = sbr.rel target = $region41
    $region40: #{tpu_custom_call.1} parent=1 // pred_region
      %58 = sst [smem:[#allocation12]] [#allocation11]
      %59 = sst [smem:[#allocation13]] [#allocation10]
    $region41: #{tpu_custom_call.1} parent=1 // pred_fallthru
      _
    %61 = shalt.err (0)
    %s63 = sshll.u32 [#allocation2], 4
    %s64 = int_to_ptr.vmem [resolvable:$true] %s63
    %66 = dma.hbm_to_vmem [thread:$0]  %s1, 32768, %s64, [#allocation3]
    %v67 = vld [vmem:[#allocation4] sm:$0xff]
    %v68 = vld [vmem:[#allocation4 + $0x8] sm:$0xff]
    %v69 = vld [vmem:[#allocation4 + $0x10] sm:$0xff]
    %v70 = vld [vmem:[#allocation4 + $0x18] sm:$0xff]
    %v71 = vld [vmem:[#allocation4 + $0x20] sm:$0xff]
    %v72 = vld [vmem:[#allocation4 + $0x28] sm:$0xff]
    %v73 = vld [vmem:[#allocation4 + $0x30] sm:$0xff]
    %v74 = vld [vmem:[#allocation4 + $0x38] sm:$0xff]
    %v75 = vld [vmem:[#allocation4 + $0x40] sm:$0xff]
    %v76 = vld [vmem:[#allocation4 + $0x48] sm:$0xff]
    %v77 = vld [vmem:[#allocation4 + $0x50] sm:$0xff]
    %v78 = vld [vmem:[#allocation4 + $0x58] sm:$0xff]
    %v79 = vld [vmem:[#allocation4 + $0x60] sm:$0xff]
    %v80 = vld [vmem:[#allocation4 + $0x68] sm:$0xff]
    %v81 = vld [vmem:[#allocation4 + $0x70] sm:$0xff]
    %v82 = vld [vmem:[#allocation4 + $0x78] sm:$0xff]
    %v83 = vld [vmem:[#allocation4 + $0x80] sm:$0xff]
    %v84 = vld [vmem:[#allocation4 + $0x88] sm:$0xff]
    %v85 = vld [vmem:[#allocation4 + $0x90] sm:$0xff]
    %v86 = vld [vmem:[#allocation4 + $0x98] sm:$0xff]
    %v87 = vld [vmem:[#allocation4 + $0xa0] sm:$0xff]
    %v88 = vld [vmem:[#allocation4 + $0xa8] sm:$0xff]
    %v89 = vld [vmem:[#allocation4 + $0xb0] sm:$0xff]
    %v90 = vld [vmem:[#allocation4 + $0xb8] sm:$0xff]
    %v91 = vld [vmem:[#allocation4 + $0xc0] sm:$0xff]
    %v92 = vld [vmem:[#allocation4 + $0xc8] sm:$0xff]
    %v93 = vld [vmem:[#allocation4 + $0xd0] sm:$0xff]
    %v94 = vld [vmem:[#allocation4 + $0xd8] sm:$0xff]
    %v95 = vld [vmem:[#allocation4 + $0xe0] sm:$0xff]
    %v96 = vld [vmem:[#allocation4 + $0xe8] sm:$0xff]
    %v97 = vld [vmem:[#allocation4 + $0xf0] sm:$0xff]
    %v98 = vld [vmem:[#allocation4 + $0xf8] sm:$0xff]
    %v99 = vmul.f32 %v67, %v67
    %v100 = vmul.f32 %v68, %v68
    %v101 = vmul.f32 %v69, %v69
    %v102 = vmul.f32 %v70, %v70
    %v103 = vmul.f32 %v71, %v71
    %v104 = vmul.f32 %v72, %v72
    %v105 = vmul.f32 %v73, %v73
    %v106 = vmul.f32 %v74, %v74
    %v107 = vmul.f32 %v75, %v75
    %v108 = vmul.f32 %v76, %v76
    %v109 = vmul.f32 %v77, %v77
    %v110 = vmul.f32 %v78, %v78
    %v111 = vmul.f32 %v79, %v79
    %v112 = vmul.f32 %v80, %v80
    %v113 = vmul.f32 %v81, %v81
    %v114 = vmul.f32 %v82, %v82
    %v115 = vmul.f32 %v83, %v83
    %v116 = vmul.f32 %v84, %v84
    %v117 = vmul.f32 %v85, %v85
    %v118 = vmul.f32 %v86, %v86
    %v119 = vmul.f32 %v87, %v87
    %v120 = vmul.f32 %v88, %v88
    %v121 = vmul.f32 %v89, %v89
    %v122 = vmul.f32 %v90, %v90
    %v123 = vmul.f32 %v91, %v91
    %v124 = vmul.f32 %v92, %v92
    %v125 = vmul.f32 %v93, %v93
    %v126 = vmul.f32 %v94, %v94
    %v127 = vmul.f32 %v95, %v95
    %v128 = vmul.f32 %v96, %v96
    %v129 = vmul.f32 %v97, %v97
    %v130 = vmul.f32 %v98, %v98
    %v131 = vadd.f32 %v99, %v100
    %v132 = vadd.f32 %v131, %v101
    %v133 = vadd.f32 %v132, %v102
    %v134 = vadd.f32 %v133, %v103
    %v135 = vadd.f32 %v134, %v104
    %v136 = vadd.f32 %v135, %v105
    %v137 = vadd.f32 %v136, %v106
    %v138 = vadd.f32 %v137, %v107
    %v139 = vadd.f32 %v138, %v108
    %v140 = vadd.f32 %v139, %v109
    %v141 = vadd.f32 %v140, %v110
    %v142 = vadd.f32 %v141, %v111
    %v143 = vadd.f32 %v142, %v112
    %v144 = vadd.f32 %v143, %v113
    %v145 = vadd.f32 %v144, %v114
    %146 = vadd.xlane.f32.xlu0 %v145
    %v147 = vpop.xlane.xlu0 %146
    %v148 = vadd.f32 %v115, %v116
    %v149 = vadd.f32 %v148, %v117
    %v150 = vadd.f32 %v149, %v118
    %v151 = vadd.f32 %v150, %v119
    %v152 = vadd.f32 %v151, %v120
    %v153 = vadd.f32 %v152, %v121
    %v154 = vadd.f32 %v153, %v122
    %v155 = vadd.f32 %v154, %v123
    %v156 = vadd.f32 %v155, %v124
    %v157 = vadd.f32 %v156, %v125
    %v158 = vadd.f32 %v157, %v126
    %v159 = vadd.f32 %v158, %v127
    %v160 = vadd.f32 %v159, %v128
    %v161 = vadd.f32 %v160, %v129
    %v162 = vadd.f32 %v161, %v130
    %163 = vadd.xlane.f32.xlu0 %v162
    %v164 = vpop.xlane.xlu0 %163
    %v165 = vmax.f32 %v147, 1e-24
    %v166 = vmax.f32 %v164, 1e-24
    %v167 = vrsqrt.pop %v165
    %v168 = vrsqrt.pop %v166
    %v169 = vpack.c.bf16 %v83, %v67
    %v170 = vpack.c.bf16 %v84, %v68
    %v171 = vpack.c.bf16 %v85, %v69
    %v172 = vpack.c.bf16 %v86, %v70
    %v173 = vpack.c.bf16 %v87, %v71
    %v174 = vpack.c.bf16 %v88, %v72
    %v175 = vpack.c.bf16 %v89, %v73
    %v176 = vpack.c.bf16 %v90, %v74
    %v177 = vpack.c.bf16 %v91, %v75
    %v178 = vpack.c.bf16 %v92, %v76
    %v179 = vpack.c.bf16 %v93, %v77
    %v180 = vpack.c.bf16 %v94, %v78
    %v181 = vpack.c.bf16 %v95, %v79
    %v182 = vpack.c.bf16 %v96, %v80
    %v183 = vpack.c.bf16 %v97, %v81
    %v184 = vpack.c.bf16 %v98, %v82
    %s185 = smul.u32 4, 256
    %s186 = smul.u32 %s185, 2
    %s187 = sshll.u32 %s186, 4
    %188 = dma.done [#allocation3], %s187
    %v189 = vld [vmem:[#allocation2] sm:$0xff]
    %v190 = vld [vmem:[#allocation2 + $0x8] sm:$0xff]
    %v191 = vld [vmem:[#allocation2 + $0x10] sm:$0xff]
    %v192 = vld [vmem:[#allocation2 + $0x18] sm:$0xff]
    %v193 = vld [vmem:[#allocation2 + $0x20] sm:$0xff]
    %v194 = vld [vmem:[#allocation2 + $0x28] sm:$0xff]
    %v195 = vld [vmem:[#allocation2 + $0x30] sm:$0xff]
    %v196 = vld [vmem:[#allocation2 + $0x38] sm:$0xff]
    %v197 = vld [vmem:[#allocation2 + $0x40] sm:$0xff]
    %v198 = vld [vmem:[#allocation2 + $0x48] sm:$0xff]
    %v199 = vld [vmem:[#allocation2 + $0x50] sm:$0xff]
    %v200 = vld [vmem:[#allocation2 + $0x58] sm:$0xff]
    %v201 = vld [vmem:[#allocation2 + $0x60] sm:$0xff]
    %v202 = vld [vmem:[#allocation2 + $0x68] sm:$0xff]
    %v203 = vld [vmem:[#allocation2 + $0x70] sm:$0xff]
    %v204 = vld [vmem:[#allocation2 + $0x78] sm:$0xff]
    %v205 = vld [vmem:[#allocation2 + $0x80] sm:$0xff]
    %v206 = vld [vmem:[#allocation2 + $0x88] sm:$0xff]
    %v207 = vld [vmem:[#allocation2 + $0x90] sm:$0xff]
    %v208 = vld [vmem:[#allocation2 + $0x98] sm:$0xff]
    %v209 = vld [vmem:[#allocation2 + $0xa0] sm:$0xff]
    %v210 = vld [vmem:[#allocation2 + $0xa8] sm:$0xff]
    %v211 = vld [vmem:[#allocation2 + $0xb0] sm:$0xff]
    %v212 = vld [vmem:[#allocation2 + $0xb8] sm:$0xff]
    %v213 = vld [vmem:[#allocation2 + $0xc0] sm:$0xff]
    %v214 = vld [vmem:[#allocation2 + $0xc8] sm:$0xff]
    %v215 = vld [vmem:[#allocation2 + $0xd0] sm:$0xff]
    %v216 = vld [vmem:[#allocation2 + $0xd8] sm:$0xff]
    %v217 = vld [vmem:[#allocation2 + $0xe0] sm:$0xff]
    %v218 = vld [vmem:[#allocation2 + $0xe8] sm:$0xff]
    %v219 = vld [vmem:[#allocation2 + $0xf0] sm:$0xff]
    %v220 = vld [vmem:[#allocation2 + $0xf8] sm:$0xff]
    %v221 = vld [vmem:[#allocation2 + $0x100] sm:$0xff]
    %v222 = vld [vmem:[#allocation2 + $0x108] sm:$0xff]
    %v223 = vld [vmem:[#allocation2 + $0x110] sm:$0xff]
    %v224 = vld [vmem:[#allocation2 + $0x118] sm:$0xff]
    %v225 = vld [vmem:[#allocation2 + $0x120] sm:$0xff]
    %v226 = vld [vmem:[#allocation2 + $0x128] sm:$0xff]
    %v227 = vld [vmem:[#allocation2 + $0x130] sm:$0xff]
    %v228 = vld [vmem:[#allocation2 + $0x138] sm:$0xff]
    %v229 = vld [vmem:[#allocation2 + $0x140] sm:$0xff]
    %v230 = vld [vmem:[#allocation2 + $0x148] sm:$0xff]
    %v231 = vld [vmem:[#allocation2 + $0x150] sm:$0xff]
    %v232 = vld [vmem:[#allocation2 + $0x158] sm:$0xff]
    %v233 = vld [vmem:[#allocation2 + $0x160] sm:$0xff]
    %v234 = vld [vmem:[#allocation2 + $0x168] sm:$0xff]
    %v235 = vld [vmem:[#allocation2 + $0x170] sm:$0xff]
    %v236 = vld [vmem:[#allocation2 + $0x178] sm:$0xff]
    %v237 = vld [vmem:[#allocation2 + $0x180] sm:$0xff]
    %v238 = vld [vmem:[#allocation2 + $0x188] sm:$0xff]
    %v239 = vld [vmem:[#allocation2 + $0x190] sm:$0xff]
    %v240 = vld [vmem:[#allocation2 + $0x198] sm:$0xff]
    %v241 = vld [vmem:[#allocation2 + $0x1a0] sm:$0xff]
    %v242 = vld [vmem:[#allocation2 + $0x1a8] sm:$0xff]
    %v243 = vld [vmem:[#allocation2 + $0x1b0] sm:$0xff]
    %v244 = vld [vmem:[#allocation2 + $0x1b8] sm:$0xff]
    %v245 = vld [vmem:[#allocation2 + $0x1c0] sm:$0xff]
    %v246 = vld [vmem:[#allocation2 + $0x1c8] sm:$0xff]
    %v247 = vld [vmem:[#allocation2 + $0x1d0] sm:$0xff]
    %v248 = vld [vmem:[#allocation2 + $0x1d8] sm:$0xff]
    %v249 = vld [vmem:[#allocation2 + $0x1e0] sm:$0xff]
    %v250 = vld [vmem:[#allocation2 + $0x1e8] sm:$0xff]
    %v251 = vld [vmem:[#allocation2 + $0x1f0] sm:$0xff]
    %v252 = vld [vmem:[#allocation2 + $0x1f8] sm:$0xff]
    %v253 = vld [vmem:[#allocation2 + $0x200] sm:$0xff]
    %v254 = vld [vmem:[#allocation2 + $0x208] sm:$0xff]
    %v255 = vld [vmem:[#allocation2 + $0x210] sm:$0xff]
    %v256 = vld [vmem:[#allocation2 + $0x218] sm:$0xff]
    %v257 = vld [vmem:[#allocation2 + $0x220] sm:$0xff]
    %v258 = vld [vmem:[#allocation2 + $0x228] sm:$0xff]
    %v259 = vld [vmem:[#allocation2 + $0x230] sm:$0xff]
    %v260 = vld [vmem:[#allocation2 + $0x238] sm:$0xff]
    %v261 = vld [vmem:[#allocation2 + $0x240] sm:$0xff]
    %v262 = vld [vmem:[#allocation2 + $0x248] sm:$0xff]
    %v263 = vld [vmem:[#allocation2 + $0x250] sm:$0xff]
    %v264 = vld [vmem:[#allocation2 + $0x258] sm:$0xff]
    %v265 = vld [vmem:[#allocation2 + $0x260] sm:$0xff]
    %v266 = vld [vmem:[#allocation2 + $0x268] sm:$0xff]
    %v267 = vld [vmem:[#allocation2 + $0x270] sm:$0xff]
    %v268 = vld [vmem:[#allocation2 + $0x278] sm:$0xff]
    %v269 = vld [vmem:[#allocation2 + $0x280] sm:$0xff]
    %v270 = vld [vmem:[#allocation2 + $0x288] sm:$0xff]
    %v271 = vld [vmem:[#allocation2 + $0x290] sm:$0xff]
    %v272 = vld [vmem:[#allocation2 + $0x298] sm:$0xff]
    %v273 = vld [vmem:[#allocation2 + $0x2a0] sm:$0xff]
    %v274 = vld [vmem:[#allocation2 + $0x2a8] sm:$0xff]
    %v275 = vld [vmem:[#allocation2 + $0x2b0] sm:$0xff]
    %v276 = vld [vmem:[#allocation2 + $0x2b8] sm:$0xff]
    %v277 = vld [vmem:[#allocation2 + $0x2c0] sm:$0xff]
    %v278 = vld [vmem:[#allocation2 + $0x2c8] sm:$0xff]
    %v279 = vld [vmem:[#allocation2 + $0x2d0] sm:$0xff]
    %v280 = vld [vmem:[#allocation2 + $0x2d8] sm:$0xff]
    %v281 = vld [vmem:[#allocation2 + $0x2e0] sm:$0xff]
    %v282 = vld [vmem:[#allocation2 + $0x2e8] sm:$0xff]
    %v283 = vld [vmem:[#allocation2 + $0x2f0] sm:$0xff]
    %v284 = vld [vmem:[#allocation2 + $0x2f8] sm:$0xff]
    %v285 = vld [vmem:[#allocation2 + $0x300] sm:$0xff]
    %v286 = vld [vmem:[#allocation2 + $0x308] sm:$0xff]
    %v287 = vld [vmem:[#allocation2 + $0x310] sm:$0xff]
    %v288 = vld [vmem:[#allocation2 + $0x318] sm:$0xff]
    %v289 = vld [vmem:[#allocation2 + $0x320] sm:$0xff]
    %v290 = vld [vmem:[#allocation2 + $0x328] sm:$0xff]
    %v291 = vld [vmem:[#allocation2 + $0x330] sm:$0xff]
    %v292 = vld [vmem:[#allocation2 + $0x338] sm:$0xff]
    %v293 = vld [vmem:[#allocation2 + $0x340] sm:$0xff]
    %v294 = vld [vmem:[#allocation2 + $0x348] sm:$0xff]
    %v295 = vld [vmem:[#allocation2 + $0x350] sm:$0xff]
    %v296 = vld [vmem:[#allocation2 + $0x358] sm:$0xff]
    %v297 = vld [vmem:[#allocation2 + $0x360] sm:$0xff]
    %v298 = vld [vmem:[#allocation2 + $0x368] sm:$0xff]
    %v299 = vld [vmem:[#allocation2 + $0x370] sm:$0xff]
    %v300 = vld [vmem:[#allocation2 + $0x378] sm:$0xff]
    %v301 = vld [vmem:[#allocation2 + $0x380] sm:$0xff]
    %v302 = vld [vmem:[#allocation2 + $0x388] sm:$0xff]
    %v303 = vld [vmem:[#allocation2 + $0x390] sm:$0xff]
    %v304 = vld [vmem:[#allocation2 + $0x398] sm:$0xff]
    %v305 = vld [vmem:[#allocation2 + $0x3a0] sm:$0xff]
    %v306 = vld [vmem:[#allocation2 + $0x3a8] sm:$0xff]
    %v307 = vld [vmem:[#allocation2 + $0x3b0] sm:$0xff]
    %v308 = vld [vmem:[#allocation2 + $0x3b8] sm:$0xff]
    %v309 = vld [vmem:[#allocation2 + $0x3c0] sm:$0xff]
    %v310 = vld [vmem:[#allocation2 + $0x3c8] sm:$0xff]
    %v311 = vld [vmem:[#allocation2 + $0x3d0] sm:$0xff]
    %v312 = vld [vmem:[#allocation2 + $0x3d8] sm:$0xff]
    %v313 = vld [vmem:[#allocation2 + $0x3e0] sm:$0xff]
    %v314 = vld [vmem:[#allocation2 + $0x3e8] sm:$0xff]
    %v315 = vld [vmem:[#allocation2 + $0x3f0] sm:$0xff]
    %v316 = vld [vmem:[#allocation2 + $0x3f8] sm:$0xff]
    %v317 = vld [vmem:[#allocation2 + $0x400] sm:$0xff]
    %v318 = vld [vmem:[#allocation2 + $0x408] sm:$0xff]
    %v319 = vld [vmem:[#allocation2 + $0x410] sm:$0xff]
    %v320 = vld [vmem:[#allocation2 + $0x418] sm:$0xff]
    %v321 = vld [vmem:[#allocation2 + $0x420] sm:$0xff]
    %v322 = vld [vmem:[#allocation2 + $0x428] sm:$0xff]
    %v323 = vld [vmem:[#allocation2 + $0x430] sm:$0xff]
    %v324 = vld [vmem:[#allocation2 + $0x438] sm:$0xff]
    %v325 = vld [vmem:[#allocation2 + $0x440] sm:$0xff]
    %v326 = vld [vmem:[#allocation2 + $0x448] sm:$0xff]
    %v327 = vld [vmem:[#allocation2 + $0x450] sm:$0xff]
    %v328 = vld [vmem:[#allocation2 + $0x458] sm:$0xff]
    %v329 = vld [vmem:[#allocation2 + $0x460] sm:$0xff]
    %v330 = vld [vmem:[#allocation2 + $0x468] sm:$0xff]
    %v331 = vld [vmem:[#allocation2 + $0x470] sm:$0xff]
    %v332 = vld [vmem:[#allocation2 + $0x478] sm:$0xff]
    %v333 = vld [vmem:[#allocation2 + $0x480] sm:$0xff]
    %v334 = vld [vmem:[#allocation2 + $0x488] sm:$0xff]
    %v335 = vld [vmem:[#allocation2 + $0x490] sm:$0xff]
    %v336 = vld [vmem:[#allocation2 + $0x498] sm:$0xff]
    %v337 = vld [vmem:[#allocation2 + $0x4a0] sm:$0xff]
    %v338 = vld [vmem:[#allocation2 + $0x4a8] sm:$0xff]
    %v339 = vld [vmem:[#allocation2 + $0x4b0] sm:$0xff]
    %v340 = vld [vmem:[#allocation2 + $0x4b8] sm:$0xff]
    %v341 = vld [vmem:[#allocation2 + $0x4c0] sm:$0xff]
    %v342 = vld [vmem:[#allocation2 + $0x4c8] sm:$0xff]
    %v343 = vld [vmem:[#allocation2 + $0x4d0] sm:$0xff]
    %v344 = vld [vmem:[#allocation2 + $0x4d8] sm:$0xff]
    %v345 = vld [vmem:[#allocation2 + $0x4e0] sm:$0xff]
    %v346 = vld [vmem:[#allocation2 + $0x4e8] sm:$0xff]
    %v347 = vld [vmem:[#allocation2 + $0x4f0] sm:$0xff]
    %v348 = vld [vmem:[#allocation2 + $0x4f8] sm:$0xff]
    %v349 = vld [vmem:[#allocation2 + $0x500] sm:$0xff]
    %v350 = vld [vmem:[#allocation2 + $0x508] sm:$0xff]
    %v351 = vld [vmem:[#allocation2 + $0x510] sm:$0xff]
    %v352 = vld [vmem:[#allocation2 + $0x518] sm:$0xff]
    %v353 = vld [vmem:[#allocation2 + $0x520] sm:$0xff]
    %v354 = vld [vmem:[#allocation2 + $0x528] sm:$0xff]
    %v355 = vld [vmem:[#allocation2 + $0x530] sm:$0xff]
    %v356 = vld [vmem:[#allocation2 + $0x538] sm:$0xff]
    %v357 = vld [vmem:[#allocation2 + $0x540] sm:$0xff]
    %v358 = vld [vmem:[#allocation2 + $0x548] sm:$0xff]
    %v359 = vld [vmem:[#allocation2 + $0x550] sm:$0xff]
    %v360 = vld [vmem:[#allocation2 + $0x558] sm:$0xff]
    %v361 = vld [vmem:[#allocation2 + $0x560] sm:$0xff]
    %v362 = vld [vmem:[#allocation2 + $0x568] sm:$0xff]
    %v363 = vld [vmem:[#allocation2 + $0x570] sm:$0xff]
    %v364 = vld [vmem:[#allocation2 + $0x578] sm:$0xff]
    %v365 = vld [vmem:[#allocation2 + $0x580] sm:$0xff]
    %v366 = vld [vmem:[#allocation2 + $0x588] sm:$0xff]
    %v367 = vld [vmem:[#allocation2 + $0x590] sm:$0xff]
    %v368 = vld [vmem:[#allocation2 + $0x598] sm:$0xff]
    %v369 = vld [vmem:[#allocation2 + $0x5a0] sm:$0xff]
    %v370 = vld [vmem:[#allocation2 + $0x5a8] sm:$0xff]
    %v371 = vld [vmem:[#allocation2 + $0x5b0] sm:$0xff]
    %v372 = vld [vmem:[#allocation2 + $0x5b8] sm:$0xff]
    %v373 = vld [vmem:[#allocation2 + $0x5c0] sm:$0xff]
    %v374 = vld [vmem:[#allocation2 + $0x5c8] sm:$0xff]
    %v375 = vld [vmem:[#allocation2 + $0x5d0] sm:$0xff]
    %v376 = vld [vmem:[#allocation2 + $0x5d8] sm:$0xff]
    %v377 = vld [vmem:[#allocation2 + $0x5e0] sm:$0xff]
    %v378 = vld [vmem:[#allocation2 + $0x5e8] sm:$0xff]
    %v379 = vld [vmem:[#allocation2 + $0x5f0] sm:$0xff]
    %v380 = vld [vmem:[#allocation2 + $0x5f8] sm:$0xff]
    %v381 = vld [vmem:[#allocation2 + $0x600] sm:$0xff]
    %v382 = vld [vmem:[#allocation2 + $0x608] sm:$0xff]
    %v383 = vld [vmem:[#allocation2 + $0x610] sm:$0xff]
    %v384 = vld [vmem:[#allocation2 + $0x618] sm:$0xff]
    %v385 = vld [vmem:[#allocation2 + $0x620] sm:$0xff]
    %v386 = vld [vmem:[#allocation2 + $0x628] sm:$0xff]
    %v387 = vld [vmem:[#allocation2 + $0x630] sm:$0xff]
    %v388 = vld [vmem:[#allocation2 + $0x638] sm:$0xff]
    %v389 = vld [vmem:[#allocation2 + $0x640] sm:$0xff]
    %v390 = vld [vmem:[#allocation2 + $0x648] sm:$0xff]
    %v391 = vld [vmem:[#allocation2 + $0x650] sm:$0xff]
    %v392 = vld [vmem:[#allocation2 + $0x658] sm:$0xff]
    %v393 = vld [vmem:[#allocation2 + $0x660] sm:$0xff]
    %v394 = vld [vmem:[#allocation2 + $0x668] sm:$0xff]
    %v395 = vld [vmem:[#allocation2 + $0x670] sm:$0xff]
    %v396 = vld [vmem:[#allocation2 + $0x678] sm:$0xff]
    %v397 = vld [vmem:[#allocation2 + $0x680] sm:$0xff]
    %v398 = vld [vmem:[#allocation2 + $0x688] sm:$0xff]
    %v399 = vld [vmem:[#allocation2 + $0x690] sm:$0xff]
    %v400 = vld [vmem:[#allocation2 + $0x698] sm:$0xff]
    %v401 = vld [vmem:[#allocation2 + $0x6a0] sm:$0xff]
    %v402 = vld [vmem:[#allocation2 + $0x6a8] sm:$0xff]
    %v403 = vld [vmem:[#allocation2 + $0x6b0] sm:$0xff]
    %v404 = vld [vmem:[#allocation2 + $0x6b8] sm:$0xff]
    %v405 = vld [vmem:[#allocation2 + $0x6c0] sm:$0xff]
    %v406 = vld [vmem:[#allocation2 + $0x6c8] sm:$0xff]
    %v407 = vld [vmem:[#allocation2 + $0x6d0] sm:$0xff]
    %v408 = vld [vmem:[#allocation2 + $0x6d8] sm:$0xff]
    %v409 = vld [vmem:[#allocation2 + $0x6e0] sm:$0xff]
    %v410 = vld [vmem:[#allocation2 + $0x6e8] sm:$0xff]
    %v411 = vld [vmem:[#allocation2 + $0x6f0] sm:$0xff]
    %v412 = vld [vmem:[#allocation2 + $0x6f8] sm:$0xff]
    %v413 = vld [vmem:[#allocation2 + $0x700] sm:$0xff]
    %v414 = vld [vmem:[#allocation2 + $0x708] sm:$0xff]
    %v415 = vld [vmem:[#allocation2 + $0x710] sm:$0xff]
    %v416 = vld [vmem:[#allocation2 + $0x718] sm:$0xff]
    %v417 = vld [vmem:[#allocation2 + $0x720] sm:$0xff]
    %v418 = vld [vmem:[#allocation2 + $0x728] sm:$0xff]
    %v419 = vld [vmem:[#allocation2 + $0x730] sm:$0xff]
    %v420 = vld [vmem:[#allocation2 + $0x738] sm:$0xff]
    %v421 = vld [vmem:[#allocation2 + $0x740] sm:$0xff]
    %v422 = vld [vmem:[#allocation2 + $0x748] sm:$0xff]
    %v423 = vld [vmem:[#allocation2 + $0x750] sm:$0xff]
    %v424 = vld [vmem:[#allocation2 + $0x758] sm:$0xff]
    %v425 = vld [vmem:[#allocation2 + $0x760] sm:$0xff]
    %v426 = vld [vmem:[#allocation2 + $0x768] sm:$0xff]
    %v427 = vld [vmem:[#allocation2 + $0x770] sm:$0xff]
    %v428 = vld [vmem:[#allocation2 + $0x778] sm:$0xff]
    %v429 = vld [vmem:[#allocation2 + $0x780] sm:$0xff]
    %v430 = vld [vmem:[#allocation2 + $0x788] sm:$0xff]
    %v431 = vld [vmem:[#allocation2 + $0x790] sm:$0xff]
    %v432 = vld [vmem:[#allocation2 + $0x798] sm:$0xff]
    %v433 = vld [vmem:[#allocation2 + $0x7a0] sm:$0xff]
    %v434 = vld [vmem:[#allocation2 + $0x7a8] sm:$0xff]
    %v435 = vld [vmem:[#allocation2 + $0x7b0] sm:$0xff]
    %v436 = vld [vmem:[#allocation2 + $0x7b8] sm:$0xff]
    %v437 = vld [vmem:[#allocation2 + $0x7c0] sm:$0xff]
    %v438 = vld [vmem:[#allocation2 + $0x7c8] sm:$0xff]
    %v439 = vld [vmem:[#allocation2 + $0x7d0] sm:$0xff]
    %v440 = vld [vmem:[#allocation2 + $0x7d8] sm:$0xff]
    %v441 = vld [vmem:[#allocation2 + $0x7e0] sm:$0xff]
    %v442 = vld [vmem:[#allocation2 + $0x7e8] sm:$0xff]
    %v443 = vld [vmem:[#allocation2 + $0x7f0] sm:$0xff]
    %v444 = vld [vmem:[#allocation2 + $0x7f8] sm:$0xff]
    %v701 = vunpack.c.l.b16 %v189
    %v702 = vunpack.c.h.b16 %v189
    %v703 = vunpack.c.l.b16 %v190
    %v704 = vunpack.c.h.b16 %v190
    %v705 = vunpack.c.l.b16 %v191
    %v706 = vunpack.c.h.b16 %v191
    %v707 = vunpack.c.l.b16 %v192
    %v708 = vunpack.c.h.b16 %v192
    %v709 = vunpack.c.l.b16 %v193
    %v710 = vunpack.c.h.b16 %v193
    %v711 = vunpack.c.l.b16 %v194
    %v712 = vunpack.c.h.b16 %v194
    %v713 = vunpack.c.l.b16 %v195
    %v714 = vunpack.c.h.b16 %v195
    %v715 = vunpack.c.l.b16 %v196
    %v716 = vunpack.c.h.b16 %v196
    %v717 = vunpack.c.l.b16 %v197
    %v718 = vunpack.c.h.b16 %v197
    %v719 = vunpack.c.l.b16 %v198
    %v720 = vunpack.c.h.b16 %v198
    %v721 = vunpack.c.l.b16 %v199
    %v722 = vunpack.c.h.b16 %v199
    %v723 = vunpack.c.l.b16 %v200
    %v724 = vunpack.c.h.b16 %v200
    %v725 = vunpack.c.l.b16 %v201
    %v726 = vunpack.c.h.b16 %v201
    %v727 = vunpack.c.l.b16 %v202
    %v728 = vunpack.c.h.b16 %v202
    %v729 = vunpack.c.l.b16 %v203
    %v730 = vunpack.c.h.b16 %v203
    %v731 = vunpack.c.l.b16 %v204
    %v732 = vunpack.c.h.b16 %v204
    %v733 = vunpack.c.l.b16 %v205
    %v734 = vunpack.c.h.b16 %v205
    %v735 = vunpack.c.l.b16 %v206
    %v736 = vunpack.c.h.b16 %v206
    %v737 = vunpack.c.l.b16 %v207
    %v738 = vunpack.c.h.b16 %v207
    %v739 = vunpack.c.l.b16 %v208
    %v740 = vunpack.c.h.b16 %v208
    %v741 = vunpack.c.l.b16 %v209
    %v742 = vunpack.c.h.b16 %v209
    %v743 = vunpack.c.l.b16 %v210
    %v744 = vunpack.c.h.b16 %v210
    %v745 = vunpack.c.l.b16 %v211
    %v746 = vunpack.c.h.b16 %v211
    %v747 = vunpack.c.l.b16 %v212
    %v748 = vunpack.c.h.b16 %v212
    %v749 = vunpack.c.l.b16 %v213
    %v750 = vunpack.c.h.b16 %v213
    %v751 = vunpack.c.l.b16 %v214
    %v752 = vunpack.c.h.b16 %v214
    %v753 = vunpack.c.l.b16 %v215
    %v754 = vunpack.c.h.b16 %v215
    %v755 = vunpack.c.l.b16 %v216
    %v756 = vunpack.c.h.b16 %v216
    %v757 = vunpack.c.l.b16 %v217
    %v758 = vunpack.c.h.b16 %v217
    %v759 = vunpack.c.l.b16 %v218
    %v760 = vunpack.c.h.b16 %v218
    %v761 = vunpack.c.l.b16 %v219
    %v762 = vunpack.c.h.b16 %v219
    %v763 = vunpack.c.l.b16 %v220
    %v764 = vunpack.c.h.b16 %v220
    %v765 = vunpack.c.l.b16 %v221
    %v766 = vunpack.c.h.b16 %v221
    %v767 = vunpack.c.l.b16 %v222
    %v768 = vunpack.c.h.b16 %v222
    %v769 = vunpack.c.l.b16 %v223
    %v770 = vunpack.c.h.b16 %v223
    %v771 = vunpack.c.l.b16 %v224
    %v772 = vunpack.c.h.b16 %v224
    %v773 = vunpack.c.l.b16 %v225
    %v774 = vunpack.c.h.b16 %v225
    %v775 = vunpack.c.l.b16 %v226
    %v776 = vunpack.c.h.b16 %v226
    %v777 = vunpack.c.l.b16 %v227
    %v778 = vunpack.c.h.b16 %v227
    %v779 = vunpack.c.l.b16 %v228
    %v780 = vunpack.c.h.b16 %v228
    %v781 = vunpack.c.l.b16 %v229
    %v782 = vunpack.c.h.b16 %v229
    %v783 = vunpack.c.l.b16 %v230
    %v784 = vunpack.c.h.b16 %v230
    %v785 = vunpack.c.l.b16 %v231
    %v786 = vunpack.c.h.b16 %v231
    %v787 = vunpack.c.l.b16 %v232
    %v788 = vunpack.c.h.b16 %v232
    %v789 = vunpack.c.l.b16 %v233
    %v790 = vunpack.c.h.b16 %v233
    %v791 = vunpack.c.l.b16 %v234
    %v792 = vunpack.c.h.b16 %v234
    %v793 = vunpack.c.l.b16 %v235
    %v794 = vunpack.c.h.b16 %v235
    %v795 = vunpack.c.l.b16 %v236
    %v796 = vunpack.c.h.b16 %v236
    %v797 = vunpack.c.l.b16 %v237
    %v798 = vunpack.c.h.b16 %v237
    %v799 = vunpack.c.l.b16 %v238
    %v800 = vunpack.c.h.b16 %v238
    %v801 = vunpack.c.l.b16 %v239
    %v802 = vunpack.c.h.b16 %v239
    %v803 = vunpack.c.l.b16 %v240
    %v804 = vunpack.c.h.b16 %v240
    %v805 = vunpack.c.l.b16 %v241
    %v806 = vunpack.c.h.b16 %v241
    %v807 = vunpack.c.l.b16 %v242
    %v808 = vunpack.c.h.b16 %v242
    %v809 = vunpack.c.l.b16 %v243
    %v810 = vunpack.c.h.b16 %v243
    %v811 = vunpack.c.l.b16 %v244
    %v812 = vunpack.c.h.b16 %v244
    %v813 = vunpack.c.l.b16 %v245
    %v814 = vunpack.c.h.b16 %v245
    %v815 = vunpack.c.l.b16 %v246
    %v816 = vunpack.c.h.b16 %v246
    %v817 = vunpack.c.l.b16 %v247
    %v818 = vunpack.c.h.b16 %v247
    %v819 = vunpack.c.l.b16 %v248
    %v820 = vunpack.c.h.b16 %v248
    %v821 = vunpack.c.l.b16 %v249
    %v822 = vunpack.c.h.b16 %v249
    %v823 = vunpack.c.l.b16 %v250
    %v824 = vunpack.c.h.b16 %v250
    %v825 = vunpack.c.l.b16 %v251
    %v826 = vunpack.c.h.b16 %v251
    %v827 = vunpack.c.l.b16 %v252
    %v828 = vunpack.c.h.b16 %v252
    %v829 = vunpack.c.l.b16 %v253
    %v830 = vunpack.c.h.b16 %v253
    %v831 = vunpack.c.l.b16 %v254
    %v832 = vunpack.c.h.b16 %v254
    %v833 = vunpack.c.l.b16 %v255
    %v834 = vunpack.c.h.b16 %v255
    %v835 = vunpack.c.l.b16 %v256
    %v836 = vunpack.c.h.b16 %v256
    %v837 = vunpack.c.l.b16 %v257
    %v838 = vunpack.c.h.b16 %v257
    %v839 = vunpack.c.l.b16 %v258
    %v840 = vunpack.c.h.b16 %v258
    %v841 = vunpack.c.l.b16 %v259
    %v842 = vunpack.c.h.b16 %v259
    %v843 = vunpack.c.l.b16 %v260
    %v844 = vunpack.c.h.b16 %v260
    %v845 = vunpack.c.l.b16 %v261
    %v846 = vunpack.c.h.b16 %v261
    %v847 = vunpack.c.l.b16 %v262
    %v848 = vunpack.c.h.b16 %v262
    %v849 = vunpack.c.l.b16 %v263
    %v850 = vunpack.c.h.b16 %v263
    %v851 = vunpack.c.l.b16 %v264
    %v852 = vunpack.c.h.b16 %v264
    %v853 = vunpack.c.l.b16 %v265
    %v854 = vunpack.c.h.b16 %v265
    %v855 = vunpack.c.l.b16 %v266
    %v856 = vunpack.c.h.b16 %v266
    %v857 = vunpack.c.l.b16 %v267
    %v858 = vunpack.c.h.b16 %v267
    %v859 = vunpack.c.l.b16 %v268
    %v860 = vunpack.c.h.b16 %v268
    %v861 = vunpack.c.l.b16 %v269
    %v862 = vunpack.c.h.b16 %v269
    %v863 = vunpack.c.l.b16 %v270
    %v864 = vunpack.c.h.b16 %v270
    %v865 = vunpack.c.l.b16 %v271
    %v866 = vunpack.c.h.b16 %v271
    %v867 = vunpack.c.l.b16 %v272
    %v868 = vunpack.c.h.b16 %v272
    %v869 = vunpack.c.l.b16 %v273
    %v870 = vunpack.c.h.b16 %v273
    %v871 = vunpack.c.l.b16 %v274
    %v872 = vunpack.c.h.b16 %v274
    %v873 = vunpack.c.l.b16 %v275
    %v874 = vunpack.c.h.b16 %v275
    %v875 = vunpack.c.l.b16 %v276
    %v876 = vunpack.c.h.b16 %v276
    %v877 = vunpack.c.l.b16 %v277
    %v878 = vunpack.c.h.b16 %v277
    %v879 = vunpack.c.l.b16 %v278
    %v880 = vunpack.c.h.b16 %v278
    %v881 = vunpack.c.l.b16 %v279
    %v882 = vunpack.c.h.b16 %v279
    %v883 = vunpack.c.l.b16 %v280
    %v884 = vunpack.c.h.b16 %v280
    %v885 = vunpack.c.l.b16 %v281
    %v886 = vunpack.c.h.b16 %v281
    %v887 = vunpack.c.l.b16 %v282
    %v888 = vunpack.c.h.b16 %v282
    %v889 = vunpack.c.l.b16 %v283
    %v890 = vunpack.c.h.b16 %v283
    %v891 = vunpack.c.l.b16 %v284
    %v892 = vunpack.c.h.b16 %v284
    %v893 = vunpack.c.l.b16 %v285
    %v894 = vunpack.c.h.b16 %v285
    %v895 = vunpack.c.l.b16 %v286
    %v896 = vunpack.c.h.b16 %v286
    %v897 = vunpack.c.l.b16 %v287
    %v898 = vunpack.c.h.b16 %v287
    %v899 = vunpack.c.l.b16 %v288
    %v900 = vunpack.c.h.b16 %v288
    %v901 = vunpack.c.l.b16 %v289
    %v902 = vunpack.c.h.b16 %v289
    %v903 = vunpack.c.l.b16 %v290
    %v904 = vunpack.c.h.b16 %v290
    %v905 = vunpack.c.l.b16 %v291
    %v906 = vunpack.c.h.b16 %v291
    %v907 = vunpack.c.l.b16 %v292
    %v908 = vunpack.c.h.b16 %v292
    %v909 = vunpack.c.l.b16 %v293
    %v910 = vunpack.c.h.b16 %v293
    %v911 = vunpack.c.l.b16 %v294
    %v912 = vunpack.c.h.b16 %v294
    %v913 = vunpack.c.l.b16 %v295
    %v914 = vunpack.c.h.b16 %v295
    %v915 = vunpack.c.l.b16 %v296
    %v916 = vunpack.c.h.b16 %v296
    %v917 = vunpack.c.l.b16 %v297
    %v918 = vunpack.c.h.b16 %v297
    %v919 = vunpack.c.l.b16 %v298
    %v920 = vunpack.c.h.b16 %v298
    %v921 = vunpack.c.l.b16 %v299
    %v922 = vunpack.c.h.b16 %v299
    %v923 = vunpack.c.l.b16 %v300
    %v924 = vunpack.c.h.b16 %v300
    %v925 = vunpack.c.l.b16 %v301
    %v926 = vunpack.c.h.b16 %v301
    %v927 = vunpack.c.l.b16 %v302
    %v928 = vunpack.c.h.b16 %v302
    %v929 = vunpack.c.l.b16 %v303
    %v930 = vunpack.c.h.b16 %v303
    %v931 = vunpack.c.l.b16 %v304
    %v932 = vunpack.c.h.b16 %v304
    %v933 = vunpack.c.l.b16 %v305
    %v934 = vunpack.c.h.b16 %v305
    %v935 = vunpack.c.l.b16 %v306
    %v936 = vunpack.c.h.b16 %v306
    %v937 = vunpack.c.l.b16 %v307
    %v938 = vunpack.c.h.b16 %v307
    %v939 = vunpack.c.l.b16 %v308
    %v940 = vunpack.c.h.b16 %v308
    %v941 = vunpack.c.l.b16 %v309
    %v942 = vunpack.c.h.b16 %v309
    %v943 = vunpack.c.l.b16 %v310
    %v944 = vunpack.c.h.b16 %v310
    %v945 = vunpack.c.l.b16 %v311
    %v946 = vunpack.c.h.b16 %v311
    %v947 = vunpack.c.l.b16 %v312
    %v948 = vunpack.c.h.b16 %v312
    %v949 = vunpack.c.l.b16 %v313
    %v950 = vunpack.c.h.b16 %v313
    %v951 = vunpack.c.l.b16 %v314
    %v952 = vunpack.c.h.b16 %v314
    %v953 = vunpack.c.l.b16 %v315
    %v954 = vunpack.c.h.b16 %v315
    %v955 = vunpack.c.l.b16 %v316
    %v956 = vunpack.c.h.b16 %v316
    %v957 = vunpack.c.l.b16 %v317
    %v958 = vunpack.c.h.b16 %v317
    %v959 = vunpack.c.l.b16 %v318
    %v960 = vunpack.c.h.b16 %v318
    %v961 = vunpack.c.l.b16 %v319
    %v962 = vunpack.c.h.b16 %v319
    %v963 = vunpack.c.l.b16 %v320
    %v964 = vunpack.c.h.b16 %v320
    %v965 = vunpack.c.l.b16 %v321
    %v966 = vunpack.c.h.b16 %v321
    %v967 = vunpack.c.l.b16 %v322
    %v968 = vunpack.c.h.b16 %v322
    %v969 = vunpack.c.l.b16 %v323
    %v970 = vunpack.c.h.b16 %v323
    %v971 = vunpack.c.l.b16 %v324
    %v972 = vunpack.c.h.b16 %v324
    %v973 = vunpack.c.l.b16 %v325
    %v974 = vunpack.c.h.b16 %v325
    %v975 = vunpack.c.l.b16 %v326
    %v976 = vunpack.c.h.b16 %v326
    %v977 = vunpack.c.l.b16 %v327
    %v978 = vunpack.c.h.b16 %v327
    %v979 = vunpack.c.l.b16 %v328
    %v980 = vunpack.c.h.b16 %v328
    %v981 = vunpack.c.l.b16 %v329
    %v982 = vunpack.c.h.b16 %v329
    %v983 = vunpack.c.l.b16 %v330
    %v984 = vunpack.c.h.b16 %v330
    %v985 = vunpack.c.l.b16 %v331
    %v986 = vunpack.c.h.b16 %v331
    %v987 = vunpack.c.l.b16 %v332
    %v988 = vunpack.c.h.b16 %v332
    %v989 = vunpack.c.l.b16 %v333
    %v990 = vunpack.c.h.b16 %v333
    %v991 = vunpack.c.l.b16 %v334
    %v992 = vunpack.c.h.b16 %v334
    %v993 = vunpack.c.l.b16 %v335
    %v994 = vunpack.c.h.b16 %v335
    %v995 = vunpack.c.l.b16 %v336
    %v996 = vunpack.c.h.b16 %v336
    %v997 = vunpack.c.l.b16 %v337
    %v998 = vunpack.c.h.b16 %v337
    %v999 = vunpack.c.l.b16 %v338
    %v1000 = vunpack.c.h.b16 %v338
    %v1001 = vunpack.c.l.b16 %v339
    %v1002 = vunpack.c.h.b16 %v339
    %v1003 = vunpack.c.l.b16 %v340
    %v1004 = vunpack.c.h.b16 %v340
    %v1005 = vunpack.c.l.b16 %v341
    %v1006 = vunpack.c.h.b16 %v341
    %v1007 = vunpack.c.l.b16 %v342
    %v1008 = vunpack.c.h.b16 %v342
    %v1009 = vunpack.c.l.b16 %v343
    %v1010 = vunpack.c.h.b16 %v343
    %v1011 = vunpack.c.l.b16 %v344
    %v1012 = vunpack.c.h.b16 %v344
    %v1013 = vunpack.c.l.b16 %v345
    %v1014 = vunpack.c.h.b16 %v345
    %v1015 = vunpack.c.l.b16 %v346
    %v1016 = vunpack.c.h.b16 %v346
    %v1017 = vunpack.c.l.b16 %v347
    %v1018 = vunpack.c.h.b16 %v347
    %v1019 = vunpack.c.l.b16 %v348
    %v1020 = vunpack.c.h.b16 %v348
    %v1021 = vunpack.c.l.b16 %v349
    %v1022 = vunpack.c.h.b16 %v349
    %v1023 = vunpack.c.l.b16 %v350
    %v1024 = vunpack.c.h.b16 %v350
    %v1025 = vunpack.c.l.b16 %v351
    %v1026 = vunpack.c.h.b16 %v351
    %v1027 = vunpack.c.l.b16 %v352
    %v1028 = vunpack.c.h.b16 %v352
    %v1029 = vunpack.c.l.b16 %v353
    %v1030 = vunpack.c.h.b16 %v353
    %v1031 = vunpack.c.l.b16 %v354
    %v1032 = vunpack.c.h.b16 %v354
    %v1033 = vunpack.c.l.b16 %v355
    %v1034 = vunpack.c.h.b16 %v355
    %v1035 = vunpack.c.l.b16 %v356
    %v1036 = vunpack.c.h.b16 %v356
    %v1037 = vunpack.c.l.b16 %v357
    %v1038 = vunpack.c.h.b16 %v357
    %v1039 = vunpack.c.l.b16 %v358
    %v1040 = vunpack.c.h.b16 %v358
    %v1041 = vunpack.c.l.b16 %v359
    %v1042 = vunpack.c.h.b16 %v359
    %v1043 = vunpack.c.l.b16 %v360
    %v1044 = vunpack.c.h.b16 %v360
    %v1045 = vunpack.c.l.b16 %v361
    %v1046 = vunpack.c.h.b16 %v361
    %v1047 = vunpack.c.l.b16 %v362
    %v1048 = vunpack.c.h.b16 %v362
    %v1049 = vunpack.c.l.b16 %v363
    %v1050 = vunpack.c.h.b16 %v363
    %v1051 = vunpack.c.l.b16 %v364
    %v1052 = vunpack.c.h.b16 %v364
    %v1053 = vunpack.c.l.b16 %v365
    %v1054 = vunpack.c.h.b16 %v365
    %v1055 = vunpack.c.l.b16 %v366
    %v1056 = vunpack.c.h.b16 %v366
    %v1057 = vunpack.c.l.b16 %v367
    %v1058 = vunpack.c.h.b16 %v367
    %v1059 = vunpack.c.l.b16 %v368
    %v1060 = vunpack.c.h.b16 %v368
    %v1061 = vunpack.c.l.b16 %v369
    %v1062 = vunpack.c.h.b16 %v369
    %v1063 = vunpack.c.l.b16 %v370
    %v1064 = vunpack.c.h.b16 %v370
    %v1065 = vunpack.c.l.b16 %v371
    %v1066 = vunpack.c.h.b16 %v371
    %v1067 = vunpack.c.l.b16 %v372
    %v1068 = vunpack.c.h.b16 %v372
    %v1069 = vunpack.c.l.b16 %v373
    %v1070 = vunpack.c.h.b16 %v373
    %v1071 = vunpack.c.l.b16 %v374
    %v1072 = vunpack.c.h.b16 %v374
    %v1073 = vunpack.c.l.b16 %v375
    %v1074 = vunpack.c.h.b16 %v375
    %v1075 = vunpack.c.l.b16 %v376
    %v1076 = vunpack.c.h.b16 %v376
    %v1077 = vunpack.c.l.b16 %v377
    %v1078 = vunpack.c.h.b16 %v377
    %v1079 = vunpack.c.l.b16 %v378
    %v1080 = vunpack.c.h.b16 %v378
    %v1081 = vunpack.c.l.b16 %v379
    %v1082 = vunpack.c.h.b16 %v379
    %v1083 = vunpack.c.l.b16 %v380
    %v1084 = vunpack.c.h.b16 %v380
    %v1085 = vunpack.c.l.b16 %v381
    %v1086 = vunpack.c.h.b16 %v381
    %v1087 = vunpack.c.l.b16 %v382
    %v1088 = vunpack.c.h.b16 %v382
    %v1089 = vunpack.c.l.b16 %v383
    %v1090 = vunpack.c.h.b16 %v383
    %v1091 = vunpack.c.l.b16 %v384
    %v1092 = vunpack.c.h.b16 %v384
    %v1093 = vunpack.c.l.b16 %v385
    %v1094 = vunpack.c.h.b16 %v385
    %v1095 = vunpack.c.l.b16 %v386
    %v1096 = vunpack.c.h.b16 %v386
    %v1097 = vunpack.c.l.b16 %v387
    %v1098 = vunpack.c.h.b16 %v387
    %v1099 = vunpack.c.l.b16 %v388
    %v1100 = vunpack.c.h.b16 %v388
    %v1101 = vunpack.c.l.b16 %v389
    %v1102 = vunpack.c.h.b16 %v389
    %v1103 = vunpack.c.l.b16 %v390
    %v1104 = vunpack.c.h.b16 %v390
    %v1105 = vunpack.c.l.b16 %v391
    %v1106 = vunpack.c.h.b16 %v391
    %v1107 = vunpack.c.l.b16 %v392
    %v1108 = vunpack.c.h.b16 %v392
    %v1109 = vunpack.c.l.b16 %v393
    %v1110 = vunpack.c.h.b16 %v393
    %v1111 = vunpack.c.l.b16 %v394
    %v1112 = vunpack.c.h.b16 %v394
    %v1113 = vunpack.c.l.b16 %v395
    %v1114 = vunpack.c.h.b16 %v395
    %v1115 = vunpack.c.l.b16 %v396
    %v1116 = vunpack.c.h.b16 %v396
    %v1117 = vunpack.c.l.b16 %v397
    %v1118 = vunpack.c.h.b16 %v397
    %v1119 = vunpack.c.l.b16 %v398
    %v1120 = vunpack.c.h.b16 %v398
    %v1121 = vunpack.c.l.b16 %v399
    %v1122 = vunpack.c.h.b16 %v399
    %v1123 = vunpack.c.l.b16 %v400
    %v1124 = vunpack.c.h.b16 %v400
    %v1125 = vunpack.c.l.b16 %v401
    %v1126 = vunpack.c.h.b16 %v401
    %v1127 = vunpack.c.l.b16 %v402
    %v1128 = vunpack.c.h.b16 %v402
    %v1129 = vunpack.c.l.b16 %v403
    %v1130 = vunpack.c.h.b16 %v403
    %v1131 = vunpack.c.l.b16 %v404
    %v1132 = vunpack.c.h.b16 %v404
    %v1133 = vunpack.c.l.b16 %v405
    %v1134 = vunpack.c.h.b16 %v405
    %v1135 = vunpack.c.l.b16 %v406
    %v1136 = vunpack.c.h.b16 %v406
    %v1137 = vunpack.c.l.b16 %v407
    %v1138 = vunpack.c.h.b16 %v407
    %v1139 = vunpack.c.l.b16 %v408
    %v1140 = vunpack.c.h.b16 %v408
    %v1141 = vunpack.c.l.b16 %v409
    %v1142 = vunpack.c.h.b16 %v409
    %v1143 = vunpack.c.l.b16 %v410
    %v1144 = vunpack.c.h.b16 %v410
    %v1145 = vunpack.c.l.b16 %v411
    %v1146 = vunpack.c.h.b16 %v411
    %v1147 = vunpack.c.l.b16 %v412
    %v1148 = vunpack.c.h.b16 %v412
    %v1149 = vunpack.c.l.b16 %v413
    %v1150 = vunpack.c.h.b16 %v413
    %v1151 = vunpack.c.l.b16 %v414
    %v1152 = vunpack.c.h.b16 %v414
    %v1153 = vunpack.c.l.b16 %v415
    %v1154 = vunpack.c.h.b16 %v415
    %v1155 = vunpack.c.l.b16 %v416
    %v1156 = vunpack.c.h.b16 %v416
    %v1157 = vunpack.c.l.b16 %v417
    %v1158 = vunpack.c.h.b16 %v417
    %v1159 = vunpack.c.l.b16 %v418
    %v1160 = vunpack.c.h.b16 %v418
    %v1161 = vunpack.c.l.b16 %v419
    %v1162 = vunpack.c.h.b16 %v419
    %v1163 = vunpack.c.l.b16 %v420
    %v1164 = vunpack.c.h.b16 %v420
    %v1165 = vunpack.c.l.b16 %v421
    %v1166 = vunpack.c.h.b16 %v421
    %v1167 = vunpack.c.l.b16 %v422
    %v1168 = vunpack.c.h.b16 %v422
    %v1169 = vunpack.c.l.b16 %v423
    %v1170 = vunpack.c.h.b16 %v423
    %v1171 = vunpack.c.l.b16 %v424
    %v1172 = vunpack.c.h.b16 %v424
    %v1173 = vunpack.c.l.b16 %v425
    %v1174 = vunpack.c.h.b16 %v425
    %v1175 = vunpack.c.l.b16 %v426
    %v1176 = vunpack.c.h.b16 %v426
    %v1177 = vunpack.c.l.b16 %v427
    %v1178 = vunpack.c.h.b16 %v427
    %v1179 = vunpack.c.l.b16 %v428
    %v1180 = vunpack.c.h.b16 %v428
    %v1181 = vunpack.c.l.b16 %v429
    %v1182 = vunpack.c.h.b16 %v429
    %v1183 = vunpack.c.l.b16 %v430
    %v1184 = vunpack.c.h.b16 %v430
    %v1185 = vunpack.c.l.b16 %v431
    %v1186 = vunpack.c.h.b16 %v431
    %v1187 = vunpack.c.l.b16 %v432
    %v1188 = vunpack.c.h.b16 %v432
    %v1189 = vunpack.c.l.b16 %v433
    %v1190 = vunpack.c.h.b16 %v433
    %v1191 = vunpack.c.l.b16 %v434
    %v1192 = vunpack.c.h.b16 %v434
    %v1193 = vunpack.c.l.b16 %v435
    %v1194 = vunpack.c.h.b16 %v435
    %v1195 = vunpack.c.l.b16 %v436
    %v1196 = vunpack.c.h.b16 %v436
    %v1197 = vunpack.c.l.b16 %v437
    %v1198 = vunpack.c.h.b16 %v437
    %v1199 = vunpack.c.l.b16 %v438
    %v1200 = vunpack.c.h.b16 %v438
    %v1201 = vunpack.c.l.b16 %v439
    %v1202 = vunpack.c.h.b16 %v439
    %v1203 = vunpack.c.l.b16 %v440
    %v1204 = vunpack.c.h.b16 %v440
    %v1205 = vunpack.c.l.b16 %v441
    %v1206 = vunpack.c.h.b16 %v441
    %v1207 = vunpack.c.l.b16 %v442
    %v1208 = vunpack.c.h.b16 %v442
    %v1209 = vunpack.c.l.b16 %v443
    %v1210 = vunpack.c.h.b16 %v443
    %v1211 = vunpack.c.l.b16 %v444
    %v1212 = vunpack.c.h.b16 %v444
    %v1213 = vpack.c.b16 %v703, %v701
    %v1214 = vpack.c.b16 %v704, %v702
    %v1215 = vpack.c.b16 %v707, %v705
    %v1216 = vpack.c.b16 %v708, %v706
    %v1217 = vpack.c.b16 %v711, %v709
    %v1218 = vpack.c.b16 %v712, %v710
    %v1219 = vpack.c.b16 %v715, %v713
    %v1220 = vpack.c.b16 %v716, %v714
    %v1221 = vpack.c.b16 %v719, %v717
    %v1222 = vpack.c.b16 %v720, %v718
    %v1223 = vpack.c.b16 %v723, %v721
    %v1224 = vpack.c.b16 %v724, %v722
    %v1225 = vpack.c.b16 %v727, %v725
    %v1226 = vpack.c.b16 %v728, %v726
    %v1227 = vpack.c.b16 %v731, %v729
    %v1228 = vpack.c.b16 %v732, %v730
    %v1229 = vpack.c.b16 %v735, %v733
    %v1230 = vpack.c.b16 %v736, %v734
    %v1231 = vpack.c.b16 %v739, %v737
    %v1232 = vpack.c.b16 %v740, %v738
    %v1233 = vpack.c.b16 %v743, %v741
    %v1234 = vpack.c.b16 %v744, %v742
    %v1235 = vpack.c.b16 %v747, %v745
    %v1236 = vpack.c.b16 %v748, %v746
    %v1237 = vpack.c.b16 %v751, %v749
    %v1238 = vpack.c.b16 %v752, %v750
    %v1239 = vpack.c.b16 %v755, %v753
    %v1240 = vpack.c.b16 %v756, %v754
    %v1241 = vpack.c.b16 %v759, %v757
    %v1242 = vpack.c.b16 %v760, %v758
    %v1243 = vpack.c.b16 %v763, %v761
    %v1244 = vpack.c.b16 %v764, %v762
    %v1245 = vpack.c.b16 %v767, %v765
    %v1246 = vpack.c.b16 %v768, %v766
    %v1247 = vpack.c.b16 %v771, %v769
    %v1248 = vpack.c.b16 %v772, %v770
    %v1249 = vpack.c.b16 %v775, %v773
    %v1250 = vpack.c.b16 %v776, %v774
    %v1251 = vpack.c.b16 %v779, %v777
    %v1252 = vpack.c.b16 %v780, %v778
    %v1253 = vpack.c.b16 %v783, %v781
    %v1254 = vpack.c.b16 %v784, %v782
    %v1255 = vpack.c.b16 %v787, %v785
    %v1256 = vpack.c.b16 %v788, %v786
    %v1257 = vpack.c.b16 %v791, %v789
    %v1258 = vpack.c.b16 %v792, %v790
    %v1259 = vpack.c.b16 %v795, %v793
    %v1260 = vpack.c.b16 %v796, %v794
    %v1261 = vpack.c.b16 %v799, %v797
    %v1262 = vpack.c.b16 %v800, %v798
    %v1263 = vpack.c.b16 %v803, %v801
    %v1264 = vpack.c.b16 %v804, %v802
    %v1265 = vpack.c.b16 %v807, %v805
    %v1266 = vpack.c.b16 %v808, %v806
    %v1267 = vpack.c.b16 %v811, %v809
    %v1268 = vpack.c.b16 %v812, %v810
    %v1269 = vpack.c.b16 %v815, %v813
    %v1270 = vpack.c.b16 %v816, %v814
    %v1271 = vpack.c.b16 %v819, %v817
    %v1272 = vpack.c.b16 %v820, %v818
    %v1273 = vpack.c.b16 %v823, %v821
    %v1274 = vpack.c.b16 %v824, %v822
    %v1275 = vpack.c.b16 %v827, %v825
    %v1276 = vpack.c.b16 %v828, %v826
    %v1277 = vpack.c.b16 %v831, %v829
    %v1278 = vpack.c.b16 %v832, %v830
    %v1279 = vpack.c.b16 %v835, %v833
    %v1280 = vpack.c.b16 %v836, %v834
    %v1281 = vpack.c.b16 %v839, %v837
    %v1282 = vpack.c.b16 %v840, %v838
    %v1283 = vpack.c.b16 %v843, %v841
    %v1284 = vpack.c.b16 %v844, %v842
    %v1285 = vpack.c.b16 %v847, %v845
    %v1286 = vpack.c.b16 %v848, %v846
    %v1287 = vpack.c.b16 %v851, %v849
    %v1288 = vpack.c.b16 %v852, %v850
    %v1289 = vpack.c.b16 %v855, %v853
    %v1290 = vpack.c.b16 %v856, %v854
    %v1291 = vpack.c.b16 %v859, %v857
    %v1292 = vpack.c.b16 %v860, %v858
    %v1293 = vpack.c.b16 %v863, %v861
    %v1294 = vpack.c.b16 %v864, %v862
    %v1295 = vpack.c.b16 %v867, %v865
    %v1296 = vpack.c.b16 %v868, %v866
    %v1297 = vpack.c.b16 %v871, %v869
    %v1298 = vpack.c.b16 %v872, %v870
    %v1299 = vpack.c.b16 %v875, %v873
    %v1300 = vpack.c.b16 %v876, %v874
    %v1301 = vpack.c.b16 %v879, %v877
    %v1302 = vpack.c.b16 %v880, %v878
    %v1303 = vpack.c.b16 %v883, %v881
    %v1304 = vpack.c.b16 %v884, %v882
    %v1305 = vpack.c.b16 %v887, %v885
    %v1306 = vpack.c.b16 %v888, %v886
    %v1307 = vpack.c.b16 %v891, %v889
    %v1308 = vpack.c.b16 %v892, %v890
    %v1309 = vpack.c.b16 %v895, %v893
    %v1310 = vpack.c.b16 %v896, %v894
    %v1311 = vpack.c.b16 %v899, %v897
    %v1312 = vpack.c.b16 %v900, %v898
    %v1313 = vpack.c.b16 %v903, %v901
    %v1314 = vpack.c.b16 %v904, %v902
    %v1315 = vpack.c.b16 %v907, %v905
    %v1316 = vpack.c.b16 %v908, %v906
    %v1317 = vpack.c.b16 %v911, %v909
    %v1318 = vpack.c.b16 %v912, %v910
    %v1319 = vpack.c.b16 %v915, %v913
    %v1320 = vpack.c.b16 %v916, %v914
    %v1321 = vpack.c.b16 %v919, %v917
    %v1322 = vpack.c.b16 %v920, %v918
    %v1323 = vpack.c.b16 %v923, %v921
    %v1324 = vpack.c.b16 %v924, %v922
    %v1325 = vpack.c.b16 %v927, %v925
    %v1326 = vpack.c.b16 %v928, %v926
    %v1327 = vpack.c.b16 %v931, %v929
    %v1328 = vpack.c.b16 %v932, %v930
    %v1329 = vpack.c.b16 %v935, %v933
    %v1330 = vpack.c.b16 %v936, %v934
    %v1331 = vpack.c.b16 %v939, %v937
    %v1332 = vpack.c.b16 %v940, %v938
    %v1333 = vpack.c.b16 %v943, %v941
    %v1334 = vpack.c.b16 %v944, %v942
    %v1335 = vpack.c.b16 %v947, %v945
    %v1336 = vpack.c.b16 %v948, %v946
    %v1337 = vpack.c.b16 %v951, %v949
    %v1338 = vpack.c.b16 %v952, %v950
    %v1339 = vpack.c.b16 %v955, %v953
    %v1340 = vpack.c.b16 %v956, %v954
    %v1341 = vpack.c.b16 %v959, %v957
    %v1342 = vpack.c.b16 %v960, %v958
    %v1343 = vpack.c.b16 %v963, %v961
    %v1344 = vpack.c.b16 %v964, %v962
    %v1345 = vpack.c.b16 %v967, %v965
    %v1346 = vpack.c.b16 %v968, %v966
    %v1347 = vpack.c.b16 %v971, %v969
    %v1348 = vpack.c.b16 %v972, %v970
    %v1349 = vpack.c.b16 %v975, %v973
    %v1350 = vpack.c.b16 %v976, %v974
    %v1351 = vpack.c.b16 %v979, %v977
    %v1352 = vpack.c.b16 %v980, %v978
    %v1353 = vpack.c.b16 %v983, %v981
    %v1354 = vpack.c.b16 %v984, %v982
    %v1355 = vpack.c.b16 %v987, %v985
    %v1356 = vpack.c.b16 %v988, %v986
    %v1357 = vpack.c.b16 %v991, %v989
    %v1358 = vpack.c.b16 %v992, %v990
    %v1359 = vpack.c.b16 %v995, %v993
    %v1360 = vpack.c.b16 %v996, %v994
    %v1361 = vpack.c.b16 %v999, %v997
    %v1362 = vpack.c.b16 %v1000, %v998
    %v1363 = vpack.c.b16 %v1003, %v1001
    %v1364 = vpack.c.b16 %v1004, %v1002
    %v1365 = vpack.c.b16 %v1007, %v1005
    %v1366 = vpack.c.b16 %v1008, %v1006
    %v1367 = vpack.c.b16 %v1011, %v1009
    %v1368 = vpack.c.b16 %v1012, %v1010
    %v1369 = vpack.c.b16 %v1015, %v1013
    %v1370 = vpack.c.b16 %v1016, %v1014
    %v1371 = vpack.c.b16 %v1019, %v1017
    %v1372 = vpack.c.b16 %v1020, %v1018
    %v1373 = vpack.c.b16 %v1023, %v1021
    %v1374 = vpack.c.b16 %v1024, %v1022
    %v1375 = vpack.c.b16 %v1027, %v1025
    %v1376 = vpack.c.b16 %v1028, %v1026
    %v1377 = vpack.c.b16 %v1031, %v1029
    %v1378 = vpack.c.b16 %v1032, %v1030
    %v1379 = vpack.c.b16 %v1035, %v1033
    %v1380 = vpack.c.b16 %v1036, %v1034
    %v1381 = vpack.c.b16 %v1039, %v1037
    %v1382 = vpack.c.b16 %v1040, %v1038
    %v1383 = vpack.c.b16 %v1043, %v1041
    %v1384 = vpack.c.b16 %v1044, %v1042
    %v1385 = vpack.c.b16 %v1047, %v1045
    %v1386 = vpack.c.b16 %v1048, %v1046
    %v1387 = vpack.c.b16 %v1051, %v1049
    %v1388 = vpack.c.b16 %v1052, %v1050
    %v1389 = vpack.c.b16 %v1055, %v1053
    %v1390 = vpack.c.b16 %v1056, %v1054
    %v1391 = vpack.c.b16 %v1059, %v1057
    %v1392 = vpack.c.b16 %v1060, %v1058
    %v1393 = vpack.c.b16 %v1063, %v1061
    %v1394 = vpack.c.b16 %v1064, %v1062
    %v1395 = vpack.c.b16 %v1067, %v1065
    %v1396 = vpack.c.b16 %v1068, %v1066
    %v1397 = vpack.c.b16 %v1071, %v1069
    %v1398 = vpack.c.b16 %v1072, %v1070
    %v1399 = vpack.c.b16 %v1075, %v1073
    %v1400 = vpack.c.b16 %v1076, %v1074
    %v1401 = vpack.c.b16 %v1079, %v1077
    %v1402 = vpack.c.b16 %v1080, %v1078
    %v1403 = vpack.c.b16 %v1083, %v1081
    %v1404 = vpack.c.b16 %v1084, %v1082
    %v1405 = vpack.c.b16 %v1087, %v1085
    %v1406 = vpack.c.b16 %v1088, %v1086
    %v1407 = vpack.c.b16 %v1091, %v1089
    %v1408 = vpack.c.b16 %v1092, %v1090
    %v1409 = vpack.c.b16 %v1095, %v1093
    %v1410 = vpack.c.b16 %v1096, %v1094
    %v1411 = vpack.c.b16 %v1099, %v1097
    %v1412 = vpack.c.b16 %v1100, %v1098
    %v1413 = vpack.c.b16 %v1103, %v1101
    %v1414 = vpack.c.b16 %v1104, %v1102
    %v1415 = vpack.c.b16 %v1107, %v1105
    %v1416 = vpack.c.b16 %v1108, %v1106
    %v1417 = vpack.c.b16 %v1111, %v1109
    %v1418 = vpack.c.b16 %v1112, %v1110
    %v1419 = vpack.c.b16 %v1115, %v1113
    %v1420 = vpack.c.b16 %v1116, %v1114
    %v1421 = vpack.c.b16 %v1119, %v1117
    %v1422 = vpack.c.b16 %v1120, %v1118
    %v1423 = vpack.c.b16 %v1123, %v1121
    %v1424 = vpack.c.b16 %v1124, %v1122
    %v1425 = vpack.c.b16 %v1127, %v1125
    %v1426 = vpack.c.b16 %v1128, %v1126
    %v1427 = vpack.c.b16 %v1131, %v1129
    %v1428 = vpack.c.b16 %v1132, %v1130
    %v1429 = vpack.c.b16 %v1135, %v1133
    %v1430 = vpack.c.b16 %v1136, %v1134
    %v1431 = vpack.c.b16 %v1139, %v1137
    %v1432 = vpack.c.b16 %v1140, %v1138
    %v1433 = vpack.c.b16 %v1143, %v1141
    %v1434 = vpack.c.b16 %v1144, %v1142
    %v1435 = vpack.c.b16 %v1147, %v1145
    %v1436 = vpack.c.b16 %v1148, %v1146
    %v1437 = vpack.c.b16 %v1151, %v1149
    %v1438 = vpack.c.b16 %v1152, %v1150
    %v1439 = vpack.c.b16 %v1155, %v1153
    %v1440 = vpack.c.b16 %v1156, %v1154
    %v1441 = vpack.c.b16 %v1159, %v1157
    %v1442 = vpack.c.b16 %v1160, %v1158
    %v1443 = vpack.c.b16 %v1163, %v1161
    %v1444 = vpack.c.b16 %v1164, %v1162
    %v1445 = vpack.c.b16 %v1167, %v1165
    %v1446 = vpack.c.b16 %v1168, %v1166
    %v1447 = vpack.c.b16 %v1171, %v1169
    %v1448 = vpack.c.b16 %v1172, %v1170
    %v1449 = vpack.c.b16 %v1175, %v1173
    %v1450 = vpack.c.b16 %v1176, %v1174
    %v1451 = vpack.c.b16 %v1179, %v1177
    %v1452 = vpack.c.b16 %v1180, %v1178
    %v1453 = vpack.c.b16 %v1183, %v1181
    %v1454 = vpack.c.b16 %v1184, %v1182
    %v1455 = vpack.c.b16 %v1187, %v1185
    %v1456 = vpack.c.b16 %v1188, %v1186
    %v1457 = vpack.c.b16 %v1191, %v1189
    %v1458 = vpack.c.b16 %v1192, %v1190
    %v1459 = vpack.c.b16 %v1195, %v1193
    %v1460 = vpack.c.b16 %v1196, %v1194
    %v1461 = vpack.c.b16 %v1199, %v1197
    %v1462 = vpack.c.b16 %v1200, %v1198
    %v1463 = vpack.c.b16 %v1203, %v1201
    %v1464 = vpack.c.b16 %v1204, %v1202
    %v1465 = vpack.c.b16 %v1207, %v1205
    %v1466 = vpack.c.b16 %v1208, %v1206
    %v1467 = vpack.c.b16 %v1211, %v1209
    %v1468 = vpack.c.b16 %v1212, %v1210
    %1725 = vmatprep.subr.bf16.mxu0 %v1228
    %1726 = vmatpush1.bf16.msra.mxu0 %v1227
    %1727 = vmatprep.subr.bf16.mxu0 %v1226
    %1728 = vmatpush1.bf16.msra.mxu0 %v1225
    %1729 = vmatprep.subr.bf16.mxu0 %v1224
    %1730 = vmatpush1.bf16.msra.mxu0 %v1223
    %1731 = vmatprep.subr.bf16.mxu0 %v1222
    %1732 = vmatpush1.bf16.msra.mxu0 %v1221
    %1733 = vmatprep.subr.bf16.mxu0 %v1220
    %1734 = vmatpush1.bf16.msra.mxu0 %v1219
    %1735 = vmatprep.subr.bf16.mxu0 %v1218
    %1736 = vmatpush1.bf16.msra.mxu0 %v1217
    %1737 = vmatprep.subr.bf16.mxu0 %v1216
    %1738 = vmatpush1.bf16.msra.mxu0 %v1215
    %1739 = vmatprep.subr.bf16.mxu0 %v1214
    %1740 = vmatpush1.bf16.msra.mxu0 %v1213
    %1741 = vmatprep.subr.bf16.mxu0 %v1244
    %1742 = vmatpush2.bf16.msra.mxu0 %v1243
    %1743 = vmatprep.subr.bf16.mxu0 %v1242
    %1744 = vmatpush2.bf16.msra.mxu0 %v1241
    %1745 = vmatprep.subr.bf16.mxu0 %v1240
    %1746 = vmatpush2.bf16.msra.mxu0 %v1239
    %1747 = vmatprep.subr.bf16.mxu0 %v1238
    %1748 = vmatpush2.bf16.msra.mxu0 %v1237
    %1749 = vmatprep.subr.bf16.mxu0 %v1236
    %1750 = vmatpush2.bf16.msra.mxu0 %v1235
    %1751 = vmatprep.subr.bf16.mxu0 %v1234
    %1752 = vmatpush2.bf16.msra.mxu0 %v1233
    %1753 = vmatprep.subr.bf16.mxu0 %v1232
    %1754 = vmatpush2.bf16.msra.mxu0 %v1231
    %1755 = vmatprep.subr.bf16.mxu0 %v1230
    %1756 = vmatpush2.bf16.msra.mxu0 %v1229
    %1757 = vmatprep.mubr.bf16.mxu0 %v170
    %1758 = vmatmul.mubr.bf16.gmra.mxu0 %v169
    %v1759 = vpop.f32.mrf.mxu0
    %v1760 = vadd.f32 0.0, %v1759
    %v1761 = vpop.f32.mrf.mxu0
    %v1762 = vadd.f32 0.0, %v1761
    %v1763 = vpop.f32.mrf.mxu0
    %v1764 = vadd.f32 0.0, %v1763
    %v1765 = vpop.f32.mrf.mxu0
    %v1766 = vadd.f32 0.0, %v1765
    %1767 = vdwg.mxu0
    %1768 = vmatprep.subr.bf16.mxu0 %v1260
    %1769 = vmatpush1.bf16.msra.mxu0 %v1259
    %1770 = vmatprep.subr.bf16.mxu0 %v1258
    %1771 = vmatpush1.bf16.msra.mxu0 %v1257
    %1772 = vmatprep.subr.bf16.mxu0 %v1256
    %1773 = vmatpush1.bf16.msra.mxu0 %v1255
    %1774 = vmatprep.subr.bf16.mxu0 %v1254
    %1775 = vmatpush1.bf16.msra.mxu0 %v1253
    %1776 = vmatprep.subr.bf16.mxu0 %v1252
    %1777 = vmatpush1.bf16.msra.mxu0 %v1251
    %1778 = vmatprep.subr.bf16.mxu0 %v1250
    %1779 = vmatpush1.bf16.msra.mxu0 %v1249
    %1780 = vmatprep.subr.bf16.mxu0 %v1248
    %1781 = vmatpush1.bf16.msra.mxu0 %v1247
    %1782 = vmatprep.subr.bf16.mxu0 %v1246
    %1783 = vmatpush1.bf16.msra.mxu0 %v1245
    %1784 = vmatprep.subr.bf16.mxu0 %v1276
    %1785 = vmatpush2.bf16.msra.mxu0 %v1275
    %1786 = vmatprep.subr.bf16.mxu0 %v1274
    %1787 = vmatpush2.bf16.msra.mxu0 %v1273
    %1788 = vmatprep.subr.bf16.mxu0 %v1272
    %1789 = vmatpush2.bf16.msra.mxu0 %v1271
    %1790 = vmatprep.subr.bf16.mxu0 %v1270
    %1791 = vmatpush2.bf16.msra.mxu0 %v1269
    %1792 = vmatprep.subr.bf16.mxu0 %v1268
    %1793 = vmatpush2.bf16.msra.mxu0 %v1267
    %1794 = vmatprep.subr.bf16.mxu0 %v1266
    %1795 = vmatpush2.bf16.msra.mxu0 %v1265
    %1796 = vmatprep.subr.bf16.mxu0 %v1264
    %1797 = vmatpush2.bf16.msra.mxu0 %v1263
    %1798 = vmatprep.subr.bf16.mxu0 %v1262
    %1799 = vmatpush2.bf16.msra.mxu0 %v1261
    %1800 = vmatprep.mubr.bf16.mxu0 %v172
    %1801 = vmatmul.mubr.bf16.gmra.mxu0 %v171
    %v1802 = vpop.f32.mrf.mxu0
    %v1803 = vadd.f32 %v1760, %v1802
    %v1804 = vpop.f32.mrf.mxu0
    %v1805 = vadd.f32 %v1762, %v1804
    %v1806 = vpop.f32.mrf.mxu0
    %v1807 = vadd.f32 %v1764, %v1806
    %v1808 = vpop.f32.mrf.mxu0
    %v1809 = vadd.f32 %v1766, %v1808
    %1810 = vdwg.mxu0
    %1811 = vmatprep.subr.bf16.mxu0 %v1292
    %1812 = vmatpush1.bf16.msra.mxu0 %v1291
    %1813 = vmatprep.subr.bf16.mxu0 %v1290
    %1814 = vmatpush1.bf16.msra.mxu0 %v1289
    %1815 = vmatprep.subr.bf16.mxu0 %v1288
    %1816 = vmatpush1.bf16.msra.mxu0 %v1287
    %1817 = vmatprep.subr.bf16.mxu0 %v1286
    %1818 = vmatpush1.bf16.msra.mxu0 %v1285
    %1819 = vmatprep.subr.bf16.mxu0 %v1284
    %1820 = vmatpush1.bf16.msra.mxu0 %v1283
    %1821 = vmatprep.subr.bf16.mxu0 %v1282
    %1822 = vmatpush1.bf16.msra.mxu0 %v1281
    %1823 = vmatprep.subr.bf16.mxu0 %v1280
    %1824 = vmatpush1.bf16.msra.mxu0 %v1279
    %1825 = vmatprep.subr.bf16.mxu0 %v1278
    %1826 = vmatpush1.bf16.msra.mxu0 %v1277
    %1827 = vmatprep.subr.bf16.mxu0 %v1308
    %1828 = vmatpush2.bf16.msra.mxu0 %v1307
    %1829 = vmatprep.subr.bf16.mxu0 %v1306
    %1830 = vmatpush2.bf16.msra.mxu0 %v1305
    %1831 = vmatprep.subr.bf16.mxu0 %v1304
    %1832 = vmatpush2.bf16.msra.mxu0 %v1303
    %1833 = vmatprep.subr.bf16.mxu0 %v1302
    %1834 = vmatpush2.bf16.msra.mxu0 %v1301
    %1835 = vmatprep.subr.bf16.mxu0 %v1300
    %1836 = vmatpush2.bf16.msra.mxu0 %v1299
    %1837 = vmatprep.subr.bf16.mxu0 %v1298
    %1838 = vmatpush2.bf16.msra.mxu0 %v1297
    %1839 = vmatprep.subr.bf16.mxu0 %v1296
    %1840 = vmatpush2.bf16.msra.mxu0 %v1295
    %1841 = vmatprep.subr.bf16.mxu0 %v1294
    %1842 = vmatpush2.bf16.msra.mxu0 %v1293
    %1843 = vmatprep.mubr.bf16.mxu0 %v174
    %1844 = vmatmul.mubr.bf16.gmra.mxu0 %v173
    %v1845 = vpop.f32.mrf.mxu0
    %v1846 = vadd.f32 %v1803, %v1845
    %v1847 = vpop.f32.mrf.mxu0
    %v1848 = vadd.f32 %v1805, %v1847
    %v1849 = vpop.f32.mrf.mxu0
    %v1850 = vadd.f32 %v1807, %v1849
    %v1851 = vpop.f32.mrf.mxu0
    %v1852 = vadd.f32 %v1809, %v1851
    %1853 = vdwg.mxu0
    %1854 = vmatprep.subr.bf16.mxu0 %v1324
    %1855 = vmatpush1.bf16.msra.mxu0 %v1323
    %1856 = vmatprep.subr.bf16.mxu0 %v1322
    %1857 = vmatpush1.bf16.msra.mxu0 %v1321
    %1858 = vmatprep.subr.bf16.mxu0 %v1320
    %1859 = vmatpush1.bf16.msra.mxu0 %v1319
    %1860 = vmatprep.subr.bf16.mxu0 %v1318
    %1861 = vmatpush1.bf16.msra.mxu0 %v1317
    %1862 = vmatprep.subr.bf16.mxu0 %v1316
    %1863 = vmatpush1.bf16.msra.mxu0 %v1315
    %1864 = vmatprep.subr.bf16.mxu0 %v1314
    %1865 = vmatpush1.bf16.msra.mxu0 %v1313
    %1866 = vmatprep.subr.bf16.mxu0 %v1312
    %1867 = vmatpush1.bf16.msra.mxu0 %v1311
    %1868 = vmatprep.subr.bf16.mxu0 %v1310
    %1869 = vmatpush1.bf16.msra.mxu0 %v1309
    %1870 = vmatprep.subr.bf16.mxu0 %v1340
    %1871 = vmatpush2.bf16.msra.mxu0 %v1339
    %1872 = vmatprep.subr.bf16.mxu0 %v1338
    %1873 = vmatpush2.bf16.msra.mxu0 %v1337
    %1874 = vmatprep.subr.bf16.mxu0 %v1336
    %1875 = vmatpush2.bf16.msra.mxu0 %v1335
    %1876 = vmatprep.subr.bf16.mxu0 %v1334
    %1877 = vmatpush2.bf16.msra.mxu0 %v1333
    %1878 = vmatprep.subr.bf16.mxu0 %v1332
    %1879 = vmatpush2.bf16.msra.mxu0 %v1331
    %1880 = vmatprep.subr.bf16.mxu0 %v1330
    %1881 = vmatpush2.bf16.msra.mxu0 %v1329
    %1882 = vmatprep.subr.bf16.mxu0 %v1328
    %1883 = vmatpush2.bf16.msra.mxu0 %v1327
    %1884 = vmatprep.subr.bf16.mxu0 %v1326
    %1885 = vmatpush2.bf16.msra.mxu0 %v1325
    %1886 = vmatprep.mubr.bf16.mxu0 %v176
    %1887 = vmatmul.mubr.bf16.gmra.mxu0 %v175
    %v1888 = vpop.f32.mrf.mxu0
    %v1889 = vadd.f32 %v1846, %v1888
    %v1890 = vpop.f32.mrf.mxu0
    %v1891 = vadd.f32 %v1848, %v1890
    %v1892 = vpop.f32.mrf.mxu0
    %v1893 = vadd.f32 %v1850, %v1892
    %v1894 = vpop.f32.mrf.mxu0
    %v1895 = vadd.f32 %v1852, %v1894
    %1896 = vdwg.mxu0
    %1897 = vmatprep.subr.bf16.mxu0 %v1356
    %1898 = vmatpush1.bf16.msra.mxu0 %v1355
    %1899 = vmatprep.subr.bf16.mxu0 %v1354
    %1900 = vmatpush1.bf16.msra.mxu0 %v1353
    %1901 = vmatprep.subr.bf16.mxu0 %v1352
    %1902 = vmatpush1.bf16.msra.mxu0 %v1351
    %1903 = vmatprep.subr.bf16.mxu0 %v1350
    %1904 = vmatpush1.bf16.msra.mxu0 %v1349
    %1905 = vmatprep.subr.bf16.mxu0 %v1348
    %1906 = vmatpush1.bf16.msra.mxu0 %v1347
    %1907 = vmatprep.subr.bf16.mxu0 %v1346
    %1908 = vmatpush1.bf16.msra.mxu0 %v1345
    %1909 = vmatprep.subr.bf16.mxu0 %v1344
    %1910 = vmatpush1.bf16.msra.mxu0 %v1343
    %1911 = vmatprep.subr.bf16.mxu0 %v1342
    %1912 = vmatpush1.bf16.msra.mxu0 %v1341
    %1913 = vmatprep.subr.bf16.mxu0 %v1372
    %1914 = vmatpush2.bf16.msra.mxu0 %v1371
    %1915 = vmatprep.subr.bf16.mxu0 %v1370
    %1916 = vmatpush2.bf16.msra.mxu0 %v1369
    %1917 = vmatprep.subr.bf16.mxu0 %v1368
    %1918 = vmatpush2.bf16.msra.mxu0 %v1367
    %1919 = vmatprep.subr.bf16.mxu0 %v1366
    %1920 = vmatpush2.bf16.msra.mxu0 %v1365
    %1921 = vmatprep.subr.bf16.mxu0 %v1364
    %1922 = vmatpush2.bf16.msra.mxu0 %v1363
    %1923 = vmatprep.subr.bf16.mxu0 %v1362
    %1924 = vmatpush2.bf16.msra.mxu0 %v1361
    %1925 = vmatprep.subr.bf16.mxu0 %v1360
    %1926 = vmatpush2.bf16.msra.mxu0 %v1359
    %1927 = vmatprep.subr.bf16.mxu0 %v1358
    %1928 = vmatpush2.bf16.msra.mxu0 %v1357
    %1929 = vmatprep.mubr.bf16.mxu0 %v178
    %1930 = vmatmul.mubr.bf16.gmra.mxu0 %v177
    %v1931 = vpop.f32.mrf.mxu0
    %v1932 = vadd.f32 %v1889, %v1931
    %v1933 = vpop.f32.mrf.mxu0
    %v1934 = vadd.f32 %v1891, %v1933
    %v1935 = vpop.f32.mrf.mxu0
    %v1936 = vadd.f32 %v1893, %v1935
    %v1937 = vpop.f32.mrf.mxu0
    %v1938 = vadd.f32 %v1895, %v1937
    %1939 = vdwg.mxu0
    %1940 = vmatprep.subr.bf16.mxu0 %v1388
    %1941 = vmatpush1.bf16.msra.mxu0 %v1387
    %1942 = vmatprep.subr.bf16.mxu0 %v1386
    %1943 = vmatpush1.bf16.msra.mxu0 %v1385
    %1944 = vmatprep.subr.bf16.mxu0 %v1384
    %1945 = vmatpush1.bf16.msra.mxu0 %v1383
    %1946 = vmatprep.subr.bf16.mxu0 %v1382
    %1947 = vmatpush1.bf16.msra.mxu0 %v1381
    %1948 = vmatprep.subr.bf16.mxu0 %v1380
    %1949 = vmatpush1.bf16.msra.mxu0 %v1379
    %1950 = vmatprep.subr.bf16.mxu0 %v1378
    %1951 = vmatpush1.bf16.msra.mxu0 %v1377
    %1952 = vmatprep.subr.bf16.mxu0 %v1376
    %1953 = vmatpush1.bf16.msra.mxu0 %v1375
    %1954 = vmatprep.subr.bf16.mxu0 %v1374
    %1955 = vmatpush1.bf16.msra.mxu0 %v1373
    %1956 = vmatprep.subr.bf16.mxu0 %v1404
    %1957 = vmatpush2.bf16.msra.mxu0 %v1403
    %1958 = vmatprep.subr.bf16.mxu0 %v1402
    %1959 = vmatpush2.bf16.msra.mxu0 %v1401
    %1960 = vmatprep.subr.bf16.mxu0 %v1400
    %1961 = vmatpush2.bf16.msra.mxu0 %v1399
    %1962 = vmatprep.subr.bf16.mxu0 %v1398
    %1963 = vmatpush2.bf16.msra.mxu0 %v1397
    %1964 = vmatprep.subr.bf16.mxu0 %v1396
    %1965 = vmatpush2.bf16.msra.mxu0 %v1395
    %1966 = vmatprep.subr.bf16.mxu0 %v1394
    %1967 = vmatpush2.bf16.msra.mxu0 %v1393
    %1968 = vmatprep.subr.bf16.mxu0 %v1392
    %1969 = vmatpush2.bf16.msra.mxu0 %v1391
    %1970 = vmatprep.subr.bf16.mxu0 %v1390
    %1971 = vmatpush2.bf16.msra.mxu0 %v1389
    %1972 = vmatprep.mubr.bf16.mxu0 %v180
    %1973 = vmatmul.mubr.bf16.gmra.mxu0 %v179
    %v1974 = vpop.f32.mrf.mxu0
    %v1975 = vadd.f32 %v1932, %v1974
    %v1976 = vpop.f32.mrf.mxu0
    %v1977 = vadd.f32 %v1934, %v1976
    %v1978 = vpop.f32.mrf.mxu0
    %v1979 = vadd.f32 %v1936, %v1978
    %v1980 = vpop.f32.mrf.mxu0
    %v1981 = vadd.f32 %v1938, %v1980
    %1982 = vdwg.mxu0
    %1983 = vmatprep.subr.bf16.mxu0 %v1420
    %1984 = vmatpush1.bf16.msra.mxu0 %v1419
    %1985 = vmatprep.subr.bf16.mxu0 %v1418
    %1986 = vmatpush1.bf16.msra.mxu0 %v1417
    %1987 = vmatprep.subr.bf16.mxu0 %v1416
    %1988 = vmatpush1.bf16.msra.mxu0 %v1415
    %1989 = vmatprep.subr.bf16.mxu0 %v1414
    %1990 = vmatpush1.bf16.msra.mxu0 %v1413
    %1991 = vmatprep.subr.bf16.mxu0 %v1412
    %1992 = vmatpush1.bf16.msra.mxu0 %v1411
    %1993 = vmatprep.subr.bf16.mxu0 %v1410
    %1994 = vmatpush1.bf16.msra.mxu0 %v1409
    %1995 = vmatprep.subr.bf16.mxu0 %v1408
    %1996 = vmatpush1.bf16.msra.mxu0 %v1407
    %1997 = vmatprep.subr.bf16.mxu0 %v1406
    %1998 = vmatpush1.bf16.msra.mxu0 %v1405
    %1999 = vmatprep.subr.bf16.mxu0 %v1436
    %2000 = vmatpush2.bf16.msra.mxu0 %v1435
    %2001 = vmatprep.subr.bf16.mxu0 %v1434
    %2002 = vmatpush2.bf16.msra.mxu0 %v1433
    %2003 = vmatprep.subr.bf16.mxu0 %v1432
    %2004 = vmatpush2.bf16.msra.mxu0 %v1431
    %2005 = vmatprep.subr.bf16.mxu0 %v1430
    %2006 = vmatpush2.bf16.msra.mxu0 %v1429
    %2007 = vmatprep.subr.bf16.mxu0 %v1428
    %2008 = vmatpush2.bf16.msra.mxu0 %v1427
    %2009 = vmatprep.subr.bf16.mxu0 %v1426
    %2010 = vmatpush2.bf16.msra.mxu0 %v1425
    %2011 = vmatprep.subr.bf16.mxu0 %v1424
    %2012 = vmatpush2.bf16.msra.mxu0 %v1423
    %2013 = vmatprep.subr.bf16.mxu0 %v1422
    %2014 = vmatpush2.bf16.msra.mxu0 %v1421
    %2015 = vmatprep.mubr.bf16.mxu0 %v182
    %2016 = vmatmul.mubr.bf16.gmra.mxu0 %v181
    %v2017 = vpop.f32.mrf.mxu0
    %v2018 = vadd.f32 %v1975, %v2017
    %v2019 = vpop.f32.mrf.mxu0
    %v2020 = vadd.f32 %v1977, %v2019
    %v2021 = vpop.f32.mrf.mxu0
    %v2022 = vadd.f32 %v1979, %v2021
    %v2023 = vpop.f32.mrf.mxu0
    %v2024 = vadd.f32 %v1981, %v2023
    %2025 = vdwg.mxu0
    %2026 = vmatprep.subr.bf16.mxu0 %v1452
    %2027 = vmatpush1.bf16.msra.mxu0 %v1451
    %2028 = vmatprep.subr.bf16.mxu0 %v1450
    %2029 = vmatpush1.bf16.msra.mxu0 %v1449
    %2030 = vmatprep.subr.bf16.mxu0 %v1448
    %2031 = vmatpush1.bf16.msra.mxu0 %v1447
    %2032 = vmatprep.subr.bf16.mxu0 %v1446
    %2033 = vmatpush1.bf16.msra.mxu0 %v1445
    %2034 = vmatprep.subr.bf16.mxu0 %v1444
    %2035 = vmatpush1.bf16.msra.mxu0 %v1443
    %2036 = vmatprep.subr.bf16.mxu0 %v1442
    %2037 = vmatpush1.bf16.msra.mxu0 %v1441
    %2038 = vmatprep.subr.bf16.mxu0 %v1440
    %2039 = vmatpush1.bf16.msra.mxu0 %v1439
    %2040 = vmatprep.subr.bf16.mxu0 %v1438
    %2041 = vmatpush1.bf16.msra.mxu0 %v1437
    %2042 = vmatprep.subr.bf16.mxu0 %v1468
    %2043 = vmatpush2.bf16.msra.mxu0 %v1467
    %2044 = vmatprep.subr.bf16.mxu0 %v1466
    %2045 = vmatpush2.bf16.msra.mxu0 %v1465
    %2046 = vmatprep.subr.bf16.mxu0 %v1464
    %2047 = vmatpush2.bf16.msra.mxu0 %v1463
    %2048 = vmatprep.subr.bf16.mxu0 %v1462
    %2049 = vmatpush2.bf16.msra.mxu0 %v1461
    %2050 = vmatprep.subr.bf16.mxu0 %v1460
    %2051 = vmatpush2.bf16.msra.mxu0 %v1459
    %2052 = vmatprep.subr.bf16.mxu0 %v1458
    %2053 = vmatpush2.bf16.msra.mxu0 %v1457
    %2054 = vmatprep.subr.bf16.mxu0 %v1456
    %2055 = vmatpush2.bf16.msra.mxu0 %v1455
    %2056 = vmatprep.subr.bf16.mxu0 %v1454
    %2057 = vmatpush2.bf16.msra.mxu0 %v1453
    %2058 = vmatprep.mubr.bf16.mxu0 %v184
    %2059 = vmatmul.mubr.bf16.gmra.mxu0 %v183
    %v2060 = vpop.f32.mrf.mxu0
    %v2061 = vadd.f32 %v2018, %v2060
    %v2062 = vpop.f32.mrf.mxu0
    %v2063 = vadd.f32 %v2020, %v2062
    %v2064 = vpop.f32.mrf.mxu0
    %v2065 = vadd.f32 %v2022, %v2064
    %v2066 = vpop.f32.mrf.mxu0
    %v2067 = vadd.f32 %v2024, %v2066
    %2068 = vdwg.mxu0
    %v2069 = vmul.f32 %v2061, %v167
    %v2070 = vmul.f32 %v2063, %v167
    %v2071 = vmul.f32 %v2065, %v168
    %v2072 = vmul.f32 %v2067, %v168
    %v2073 = vadd.f32 %v2069, %v2071
    %v2074 = vrot.slane %v2073, 4
    %v2075 = vadd.f32 %v2073, %v2074
    %v2076 = vrot.slane %v2075, 2
    %v2077 = vadd.f32 %v2075, %v2076
    %v2078 = vrot.slane %v2077, 1
    %v2079 = vadd.f32 %v2077, %v2078
    %v2080 = vadd.f32 %v2070, %v2072
    %v2081 = vrot.slane %v2080, 4
    %v2082 = vadd.f32 %v2080, %v2081
    %v2083 = vrot.slane %v2082, 2
    %v2084 = vadd.f32 %v2082, %v2083
    %v2085 = vrot.slane %v2084, 1
    %v2086 = vadd.f32 %v2084, %v2085
    %v2087 = vmul.f32 %v2079, 0.0625
    %v2088 = vmul.f32 %v2086, 0.0625
    %v2089 = vsub.f32 %v2069, %v2087
    %v2090 = vsub.f32 %v2070, %v2088
    %v2091 = vsub.f32 %v2071, %v2087
    %v2092 = vsub.f32 %v2072, %v2088
    %v2093 = vmul.f32 %v2089, %v2089
    %v2094 = vmul.f32 %v2090, %v2090
    %v2095 = vmul.f32 %v2091, %v2091
    %v2096 = vmul.f32 %v2092, %v2092
    %v2097 = vadd.f32 %v2093, %v2095
    %v2098 = vrot.slane %v2097, 4
    %v2099 = vadd.f32 %v2097, %v2098
    %v2100 = vrot.slane %v2099, 2
    %v2101 = vadd.f32 %v2099, %v2100
    %v2102 = vrot.slane %v2101, 1
    %v2103 = vadd.f32 %v2101, %v2102
    %v2104 = vadd.f32 %v2094, %v2096
    %v2105 = vrot.slane %v2104, 4
    %v2106 = vadd.f32 %v2104, %v2105
    %v2107 = vrot.slane %v2106, 2
    %v2108 = vadd.f32 %v2106, %v2107
    %v2109 = vrot.slane %v2108, 1
    %v2110 = vadd.f32 %v2108, %v2109
    %v2111 = vmul.f32 %v2103, 0.0625
    %v2112 = vmul.f32 %v2110, 0.0625
    %v2113 = vld [vmem:[%s2] sm:$0x3]
    %v2114 = vadd.f32 %v2111, 1e-05
    %v2115 = vadd.f32 %v2112, 1e-05
    %v2116 = vrsqrt.pop %v2114
    %v2117 = vrsqrt.pop %v2115
    %v2120 = vcombine.low %v2116, %v2117
    %v2122 = vunpack.c.l.s4 1966171168
    %v2123 = vunpack.c.0.s8 %v2122
    %v2124 = vlaneseq
    %v2125 = vshrl.u32 %v2124, 7
    %v2126 = vsub.s32 %v2123, %v2125
    %v2127 = vrot.slane %v2120, %v2126
    %v2129 = vunpack.c.l.s4 1966171168
    %v2130 = vunpack.c.0.s8 %v2129
    %v2131 = vlaneseq
    %v2132 = vshrl.u32 %v2131, 7
    %v2133 = vsub.s32 %v2130, %v2132
    %v2134 = vrot.slane %v2127, %v2133
    %v2136 = vmul.f32 %v2113, %v2134
    %v2138 = vlaneseq
    %v2139 = vshrl.u32 %v2138, 7
    %v2140 = vsub.s32 0, %v2139
    %v2141 = vrot.slane %v2136, %v2140
    %v2142 = vlaneseq
    %v2143 = vshrl.u32 %v2142, 7
    %v2144 = vsub.s32 1, %v2143
    %v2145 = vrot.slane %v2136, %v2144
    %v2148 = vmul.f32 %v2089, %v2141
    %v2149 = vmul.f32 %v2090, %v2145
    %v2150 = vmul.f32 %v2091, %v2141
    %v2151 = vmul.f32 %v2092, %v2145
    %v2152 = vld [vmem:[%s3] sm:$0x3]
    %v2154 = vlaneseq
    %v2155 = vshrl.u32 %v2154, 7
    %v2156 = vsub.s32 0, %v2155
    %v2157 = vrot.slane %v2152, %v2156
    %v2158 = vlaneseq
    %v2159 = vshrl.u32 %v2158, 7
    %v2160 = vsub.s32 1, %v2159
    %v2161 = vrot.slane %v2152, %v2160
    %v2164 = vadd.f32 %v2148, %v2157
    %v2165 = vadd.f32 %v2149, %v2161
    %v2166 = vadd.f32 %v2150, %v2157
    %v2167 = vadd.f32 %v2151, %v2161
    %v2168 = vmax.f32 %v2164, 0.0
    %v2169 = vmax.f32 %v2165, 0.0
    %v2170 = vmax.f32 %v2166, 0.0
    %v2171 = vmax.f32 %v2167, 0.0
    %v2172 = vpack.c.bf16 %v2170, %v2168
    %v2173 = vpack.c.bf16 %v2171, %v2169
    %v2174 = vld [vmem:[#allocation7] sm:$0xff]
    %v2175 = vld [vmem:[#allocation7 + $0x8] sm:$0xff]
    %v2176 = vld [vmem:[#allocation7 + $0x10] sm:$0xff]
    %v2177 = vld [vmem:[#allocation7 + $0x18] sm:$0xff]
    %v2178 = vld [vmem:[#allocation7 + $0x20] sm:$0xff]
    %v2179 = vld [vmem:[#allocation7 + $0x28] sm:$0xff]
    %v2180 = vld [vmem:[#allocation7 + $0x30] sm:$0xff]
    %v2181 = vld [vmem:[#allocation7 + $0x38] sm:$0xff]
    %v2182 = vld [vmem:[#allocation7 + $0x40] sm:$0xff]
    %v2183 = vld [vmem:[#allocation7 + $0x48] sm:$0xff]
    %v2184 = vld [vmem:[#allocation7 + $0x50] sm:$0xff]
    %v2185 = vld [vmem:[#allocation7 + $0x58] sm:$0xff]
    %v2186 = vld [vmem:[#allocation7 + $0x60] sm:$0xff]
    %v2187 = vld [vmem:[#allocation7 + $0x68] sm:$0xff]
    %v2188 = vld [vmem:[#allocation7 + $0x70] sm:$0xff]
    %v2189 = vld [vmem:[#allocation7 + $0x78] sm:$0xff]
    %v2190 = vld [vmem:[#allocation7 + $0x80] sm:$0xff]
    %v2191 = vld [vmem:[#allocation7 + $0x88] sm:$0xff]
    %v2192 = vld [vmem:[#allocation7 + $0x90] sm:$0xff]
    %v2193 = vld [vmem:[#allocation7 + $0x98] sm:$0xff]
    %v2194 = vld [vmem:[#allocation7 + $0xa0] sm:$0xff]
    %v2195 = vld [vmem:[#allocation7 + $0xa8] sm:$0xff]
    %v2196 = vld [vmem:[#allocation7 + $0xb0] sm:$0xff]
    %v2197 = vld [vmem:[#allocation7 + $0xb8] sm:$0xff]
    %v2198 = vld [vmem:[#allocation7 + $0xc0] sm:$0xff]
    %v2199 = vld [vmem:[#allocation7 + $0xc8] sm:$0xff]
    %v2200 = vld [vmem:[#allocation7 + $0xd0] sm:$0xff]
    %v2201 = vld [vmem:[#allocation7 + $0xd8] sm:$0xff]
    %v2202 = vld [vmem:[#allocation7 + $0xe0] sm:$0xff]
    %v2203 = vld [vmem:[#allocation7 + $0xe8] sm:$0xff]
    %v2204 = vld [vmem:[#allocation7 + $0xf0] sm:$0xff]
    %v2205 = vld [vmem:[#allocation7 + $0xf8] sm:$0xff]
    %v2206 = vld [vmem:[%s5] sm:$0x3]
    %v2208 = vlaneseq
    %v2209 = vshrl.u32 %v2208, 7
    %v2210 = vsub.s32 0, %v2209
    %v2211 = vrot.slane %v2206, %v2210
    %v2212 = vlaneseq
    %v2213 = vshrl.u32 %v2212, 7
    %v2214 = vsub.s32 1, %v2213
    %v2215 = vrot.slane %v2206, %v2214
    %v2250 = vunpack.c.l.b16 %v2174
    %v2251 = vunpack.c.h.b16 %v2174
    %v2252 = vunpack.c.l.b16 %v2175
    %v2253 = vunpack.c.h.b16 %v2175
    %v2254 = vunpack.c.l.b16 %v2176
    %v2255 = vunpack.c.h.b16 %v2176
    %v2256 = vunpack.c.l.b16 %v2177
    %v2257 = vunpack.c.h.b16 %v2177
    %v2258 = vunpack.c.l.b16 %v2178
    %v2259 = vunpack.c.h.b16 %v2178
    %v2260 = vunpack.c.l.b16 %v2179
    %v2261 = vunpack.c.h.b16 %v2179
    %v2262 = vunpack.c.l.b16 %v2180
    %v2263 = vunpack.c.h.b16 %v2180
    %v2264 = vunpack.c.l.b16 %v2181
    %v2265 = vunpack.c.h.b16 %v2181
    %v2266 = vunpack.c.l.b16 %v2182
    %v2267 = vunpack.c.h.b16 %v2182
    %v2268 = vunpack.c.l.b16 %v2183
    %v2269 = vunpack.c.h.b16 %v2183
    %v2270 = vunpack.c.l.b16 %v2184
    %v2271 = vunpack.c.h.b16 %v2184
    %v2272 = vunpack.c.l.b16 %v2185
    %v2273 = vunpack.c.h.b16 %v2185
    %v2274 = vunpack.c.l.b16 %v2186
    %v2275 = vunpack.c.h.b16 %v2186
    %v2276 = vunpack.c.l.b16 %v2187
    %v2277 = vunpack.c.h.b16 %v2187
    %v2278 = vunpack.c.l.b16 %v2188
    %v2279 = vunpack.c.h.b16 %v2188
    %v2280 = vunpack.c.l.b16 %v2189
    %v2281 = vunpack.c.h.b16 %v2189
    %v2282 = vunpack.c.l.b16 %v2190
    %v2283 = vunpack.c.h.b16 %v2190
    %v2284 = vunpack.c.l.b16 %v2191
    %v2285 = vunpack.c.h.b16 %v2191
    %v2286 = vunpack.c.l.b16 %v2192
    %v2287 = vunpack.c.h.b16 %v2192
    %v2288 = vunpack.c.l.b16 %v2193
    %v2289 = vunpack.c.h.b16 %v2193
    %v2290 = vunpack.c.l.b16 %v2194
    %v2291 = vunpack.c.h.b16 %v2194
    %v2292 = vunpack.c.l.b16 %v2195
    %v2293 = vunpack.c.h.b16 %v2195
    %v2294 = vunpack.c.l.b16 %v2196
    %v2295 = vunpack.c.h.b16 %v2196
    %v2296 = vunpack.c.l.b16 %v2197
    %v2297 = vunpack.c.h.b16 %v2197
    %v2298 = vunpack.c.l.b16 %v2198
    %v2299 = vunpack.c.h.b16 %v2198
    %v2300 = vunpack.c.l.b16 %v2199
    %v2301 = vunpack.c.h.b16 %v2199
    %v2302 = vunpack.c.l.b16 %v2200
    %v2303 = vunpack.c.h.b16 %v2200
    %v2304 = vunpack.c.l.b16 %v2201
    %v2305 = vunpack.c.h.b16 %v2201
    %v2306 = vunpack.c.l.b16 %v2202
    %v2307 = vunpack.c.h.b16 %v2202
    %v2308 = vunpack.c.l.b16 %v2203
    %v2309 = vunpack.c.h.b16 %v2203
    %v2310 = vunpack.c.l.b16 %v2204
    %v2311 = vunpack.c.h.b16 %v2204
    %v2312 = vunpack.c.l.b16 %v2205
    %v2313 = vunpack.c.h.b16 %v2205
    %v2314 = vpack.c.b16 %v2252, %v2250
    %v2315 = vpack.c.b16 %v2253, %v2251
    %v2316 = vpack.c.b16 %v2256, %v2254
    %v2317 = vpack.c.b16 %v2257, %v2255
    %v2318 = vpack.c.b16 %v2260, %v2258
    %v2319 = vpack.c.b16 %v2261, %v2259
    %v2320 = vpack.c.b16 %v2264, %v2262
    %v2321 = vpack.c.b16 %v2265, %v2263
    %v2322 = vpack.c.b16 %v2268, %v2266
    %v2323 = vpack.c.b16 %v2269, %v2267
    %v2324 = vpack.c.b16 %v2272, %v2270
    %v2325 = vpack.c.b16 %v2273, %v2271
    %v2326 = vpack.c.b16 %v2276, %v2274
    %v2327 = vpack.c.b16 %v2277, %v2275
    %v2328 = vpack.c.b16 %v2280, %v2278
    %v2329 = vpack.c.b16 %v2281, %v2279
    %v2330 = vpack.c.b16 %v2284, %v2282
    %v2331 = vpack.c.b16 %v2285, %v2283
    %v2332 = vpack.c.b16 %v2288, %v2286
    %v2333 = vpack.c.b16 %v2289, %v2287
    %v2334 = vpack.c.b16 %v2292, %v2290
    %v2335 = vpack.c.b16 %v2293, %v2291
    %v2336 = vpack.c.b16 %v2296, %v2294
    %v2337 = vpack.c.b16 %v2297, %v2295
    %v2338 = vpack.c.b16 %v2300, %v2298
    %v2339 = vpack.c.b16 %v2301, %v2299
    %v2340 = vpack.c.b16 %v2304, %v2302
    %v2341 = vpack.c.b16 %v2305, %v2303
    %v2342 = vpack.c.b16 %v2308, %v2306
    %v2343 = vpack.c.b16 %v2309, %v2307
    %v2344 = vpack.c.b16 %v2312, %v2310
    %v2345 = vpack.c.b16 %v2313, %v2311
    %2378 = vmatprep.subr.bf16.mxu0 %v2329
    %2379 = vmatpush1.bf16.msra.mxu0 %v2328
    %2380 = vmatprep.subr.bf16.mxu0 %v2327
    %2381 = vmatpush1.bf16.msra.mxu0 %v2326
    %2382 = vmatprep.subr.bf16.mxu0 %v2325
    %2383 = vmatpush1.bf16.msra.mxu0 %v2324
    %2384 = vmatprep.subr.bf16.mxu0 %v2323
    %2385 = vmatpush1.bf16.msra.mxu0 %v2322
    %2386 = vmatprep.subr.bf16.mxu0 %v2321
    %2387 = vmatpush1.bf16.msra.mxu0 %v2320
    %2388 = vmatprep.subr.bf16.mxu0 %v2319
    %2389 = vmatpush1.bf16.msra.mxu0 %v2318
    %2390 = vmatprep.subr.bf16.mxu0 %v2317
    %2391 = vmatpush1.bf16.msra.mxu0 %v2316
    %2392 = vmatprep.subr.bf16.mxu0 %v2315
    %2393 = vmatpush1.bf16.msra.mxu0 %v2314
    %2394 = vmatprep.subr.bf16.mxu0 %v2345
    %2395 = vmatpush2.bf16.msra.mxu0 %v2344
    %2396 = vmatprep.subr.bf16.mxu0 %v2343
    %2397 = vmatpush2.bf16.msra.mxu0 %v2342
    %2398 = vmatprep.subr.bf16.mxu0 %v2341
    %2399 = vmatpush2.bf16.msra.mxu0 %v2340
    %2400 = vmatprep.subr.bf16.mxu0 %v2339
    %2401 = vmatpush2.bf16.msra.mxu0 %v2338
    %2402 = vmatprep.subr.bf16.mxu0 %v2337
    %2403 = vmatpush2.bf16.msra.mxu0 %v2336
    %2404 = vmatprep.subr.bf16.mxu0 %v2335
    %2405 = vmatpush2.bf16.msra.mxu0 %v2334
    %2406 = vmatprep.subr.bf16.mxu0 %v2333
    %2407 = vmatpush2.bf16.msra.mxu0 %v2332
    %2408 = vmatprep.subr.bf16.mxu0 %v2331
    %2409 = vmatpush2.bf16.msra.mxu0 %v2330
    %2410 = vmatprep.mubr.bf16.mxu0 %v2173
    %2411 = vmatmul.mubr.bf16.gmra.mxu0 %v2172
    %v2412 = vpop.f32.mrf.mxu0
    %v2413 = vadd.f32 %v2211, %v2412
    %v2414 = vpop.f32.mrf.mxu0
    %v2415 = vadd.f32 %v2215, %v2414
    %v2416 = vpop.f32.mrf.mxu0
    %v2417 = vadd.f32 %v2211, %v2416
    %v2418 = vpop.f32.mrf.mxu0
    %v2419 = vadd.f32 %v2215, %v2418
    %2420 = vdwg.mxu0
    %v2421 = vadd.f32 %v2413, %v2417
    %v2422 = vrot.slane %v2421, 4
    %v2423 = vadd.f32 %v2421, %v2422
    %v2424 = vrot.slane %v2423, 2
    %v2425 = vadd.f32 %v2423, %v2424
    %v2426 = vrot.slane %v2425, 1
    %v2427 = vadd.f32 %v2425, %v2426
    %v2428 = vadd.f32 %v2415, %v2419
    %v2429 = vrot.slane %v2428, 4
    %v2430 = vadd.f32 %v2428, %v2429
    %v2431 = vrot.slane %v2430, 2
    %v2432 = vadd.f32 %v2430, %v2431
    %v2433 = vrot.slane %v2432, 1
    %v2434 = vadd.f32 %v2432, %v2433
    %v2435 = vmul.f32 %v2427, 0.0625
    %v2436 = vmul.f32 %v2434, 0.0625
    %v2437 = vsub.f32 %v2413, %v2435
    %v2438 = vsub.f32 %v2415, %v2436
    %v2439 = vsub.f32 %v2417, %v2435
    %v2440 = vsub.f32 %v2419, %v2436
    %v2441 = vmul.f32 %v2437, %v2437
    %v2442 = vmul.f32 %v2438, %v2438
    %v2443 = vmul.f32 %v2439, %v2439
    %v2444 = vmul.f32 %v2440, %v2440
    %v2445 = vadd.f32 %v2441, %v2443
    %v2446 = vrot.slane %v2445, 4
    %v2447 = vadd.f32 %v2445, %v2446
    %v2448 = vrot.slane %v2447, 2
    %v2449 = vadd.f32 %v2447, %v2448
    %v2450 = vrot.slane %v2449, 1
    %v2451 = vadd.f32 %v2449, %v2450
    %v2452 = vadd.f32 %v2442, %v2444
    %v2453 = vrot.slane %v2452, 4
    %v2454 = vadd.f32 %v2452, %v2453
    %v2455 = vrot.slane %v2454, 2
    %v2456 = vadd.f32 %v2454, %v2455
    %v2457 = vrot.slane %v2456, 1
    %v2458 = vadd.f32 %v2456, %v2457
    %v2459 = vmul.f32 %v2451, 0.0625
    %v2460 = vmul.f32 %v2458, 0.0625
    %v2461 = vld [vmem:[%s6] sm:$0x3]
    %v2462 = vadd.f32 %v2459, 1e-05
    %v2463 = vadd.f32 %v2460, 1e-05
    %v2464 = vrsqrt.pop %v2462
    %v2465 = vrsqrt.pop %v2463
    %v2468 = vcombine.low %v2464, %v2465
    %v2470 = vunpack.c.l.s4 1966171168
    %v2471 = vunpack.c.0.s8 %v2470
    %v2472 = vlaneseq
    %v2473 = vshrl.u32 %v2472, 7
    %v2474 = vsub.s32 %v2471, %v2473
    %v2475 = vrot.slane %v2468, %v2474
    %v2477 = vunpack.c.l.s4 1966171168
    %v2478 = vunpack.c.0.s8 %v2477
    %v2479 = vlaneseq
    %v2480 = vshrl.u32 %v2479, 7
    %v2481 = vsub.s32 %v2478, %v2480
    %v2482 = vrot.slane %v2475, %v2481
    %v2484 = vmul.f32 %v2461, %v2482
    %v2486 = vlaneseq
    %v2487 = vshrl.u32 %v2486, 7
    %v2488 = vsub.s32 0, %v2487
    %v2489 = vrot.slane %v2484, %v2488
    %v2490 = vlaneseq
    %v2491 = vshrl.u32 %v2490, 7
    %v2492 = vsub.s32 1, %v2491
    %v2493 = vrot.slane %v2484, %v2492
    %v2496 = vmul.f32 %v2437, %v2489
    %v2497 = vmul.f32 %v2438, %v2493
    %v2498 = vmul.f32 %v2439, %v2489
    %v2499 = vmul.f32 %v2440, %v2493
    %v2500 = vld [vmem:[%s7] sm:$0x3]
    %v2502 = vlaneseq
    %v2503 = vshrl.u32 %v2502, 7
    %v2504 = vsub.s32 0, %v2503
    %v2505 = vrot.slane %v2500, %v2504
    %v2506 = vlaneseq
    %v2507 = vshrl.u32 %v2506, 7
    %v2508 = vsub.s32 1, %v2507
    %v2509 = vrot.slane %v2500, %v2508
    %v2512 = vadd.f32 %v2496, %v2505
    %v2513 = vadd.f32 %v2497, %v2509
    %v2514 = vadd.f32 %v2498, %v2505
    %v2515 = vadd.f32 %v2499, %v2509
    %v2516 = vmul.f32 %v2512, %v2512
    %v2517 = vmul.f32 %v2513, %v2513
    %v2518 = vmul.f32 %v2514, %v2514
    %v2519 = vmul.f32 %v2515, %v2515
    %v2520 = vadd.f32 %v2516, %v2517
    %2521 = vadd.xlane.f32.xlu0 %v2520
    %v2522 = vpop.xlane.xlu0 %2521
    %v2523 = vadd.f32 %v2518, %v2519
    %2524 = vadd.xlane.f32.xlu0 %v2523
    %v2525 = vpop.xlane.xlu0 %2524
    %v2526 = vmax.f32 %v2522, 1e-24
    %v2527 = vmax.f32 %v2525, 1e-24
    %v2528 = vrsqrt.pop %v2526
    %v2529 = vrsqrt.pop %v2527
    %v2530 = vmul.f32 %v2512, %v2528
    %v2531 = vmul.f32 %v2513, %v2528
    %v2532 = vmul.f32 %v2514, %v2529
    %v2533 = vmul.f32 %v2515, %v2529
    %2534 = vmatprep.subr.mxu0 0.0
    %2535 = vmatpush1.xpose.msra.mxu0 0.0
    %2536 = vmatprep.subr.mxu0 0.0
    %2537 = vmatpush1.xpose.msra.mxu0 0.0
    %2538 = vmatprep.subr.mxu0 0.0
    %2539 = vmatpush1.xpose.msra.mxu0 0.0
    %2540 = vmatprep.subr.mxu0 0.0
    %2541 = vmatpush1.xpose.msra.mxu0 0.0
    %2542 = vmatprep.subr.mxu0 0.0
    %2543 = vmatpush1.xpose.msra.mxu0 0.0
    %2544 = vmatprep.subr.mxu0 0.0
    %2545 = vmatpush1.xpose.msra.mxu0 0.0
    %2546 = vmatprep.subr.mxu0 0.0
    %2547 = vmatpush1.xpose.msra.mxu0 0.0
    %2548 = vmatprep.subr.mxu0 0.0
    %2549 = vmatpush1.xpose.msra.mxu0 0.0
    %2550 = vmatprep.subr.mxu0 0.0
    %2551 = vmatpush1.xpose.msra.mxu0 0.0
    %2552 = vmatprep.subr.mxu0 0.0
    %2553 = vmatpush1.xpose.msra.mxu0 0.0
    %2554 = vmatprep.subr.mxu0 0.0
    %2555 = vmatpush1.xpose.msra.mxu0 0.0
    %2556 = vmatprep.subr.mxu0 0.0
    %2557 = vmatpush1.xpose.msra.mxu0 0.0
    %2558 = vmatprep.subr.mxu0 0.0
    %2559 = vmatpush1.xpose.msra.mxu0 0.0
    %2560 = vmatprep.subr.mxu0 0.0
    %2561 = vmatpush1.xpose.msra.mxu0 0.0
    %2562 = vmatprep.subr.mxu0 0.0
    %2563 = vmatpush1.xpose.msra.mxu0 0.0
    %v2564 = vand.u32 %v2533, 4294901760
    %2565 = vmatprep.subr.mxu0 %v2564
    %v2566 = vand.u32 %v2532, 4294901760
    %2567 = vmatpush1.xpose.msra.mxu0 %v2566
    %2568 = vmatprep.subr.mxu0 0.0
    %2569 = vmatpush2.xpose.msra.mxu0 0.0
    %2570 = vmatprep.subr.mxu0 0.0
    %2571 = vmatpush2.xpose.msra.mxu0 0.0
    %2572 = vmatprep.subr.mxu0 0.0
    %2573 = vmatpush2.xpose.msra.mxu0 0.0
    %2574 = vmatprep.subr.mxu0 0.0
    %2575 = vmatpush2.xpose.msra.mxu0 0.0
    %2576 = vmatprep.subr.mxu0 0.0
    %2577 = vmatpush2.xpose.msra.mxu0 0.0
    %2578 = vmatprep.subr.mxu0 0.0
    %2579 = vmatpush2.xpose.msra.mxu0 0.0
    %2580 = vmatprep.subr.mxu0 0.0
    %2581 = vmatpush2.xpose.msra.mxu0 0.0
    %2582 = vmatprep.subr.mxu0 0.0
    %2583 = vmatpush2.xpose.msra.mxu0 0.0
    %2584 = vmatprep.subr.mxu0 0.0
    %2585 = vmatpush2.xpose.msra.mxu0 0.0
    %2586 = vmatprep.subr.mxu0 0.0
    %2587 = vmatpush2.xpose.msra.mxu0 0.0
    %2588 = vmatprep.subr.mxu0 0.0
    %2589 = vmatpush2.xpose.msra.mxu0 0.0
    %2590 = vmatprep.subr.mxu0 0.0
    %2591 = vmatpush2.xpose.msra.mxu0 0.0
    %2592 = vmatprep.subr.mxu0 0.0
    %2593 = vmatpush2.xpose.msra.mxu0 0.0
    %2594 = vmatprep.subr.mxu0 0.0
    %2595 = vmatpush2.xpose.msra.mxu0 0.0
    %2596 = vmatprep.subr.mxu0 0.0
    %2597 = vmatpush2.xpose.msra.mxu0 0.0
    %2598 = vmatprep.subr.mxu0 0.0
    %2599 = vmatpush2.xpose.msra.mxu0 0.0
    %v2600 = vand.u32 %v2531, 4294901760
    %v2601 = vsub.f32 %v2531, %v2600
    %v2602 = vand.u32 %v2601, 4294901760
    %v2603 = vsub.f32 %v2601, %v2602
    %v2604 = vand.u32 %v2603, 4294901760
    %2605 = vmatprep.mubr.f32.mxu0 %v2604
    %v2606 = vand.u32 %v2530, 4294901760
    %v2607 = vsub.f32 %v2530, %v2606
    %v2608 = vand.u32 %v2607, 4294901760
    %v2609 = vsub.f32 %v2607, %v2608
    %v2610 = vand.u32 %v2609, 4294901760
    %2611 = vmatmul.mubr.f32.gmra.mxu0 %v2610
    %v2612 = vpop.f32.mrf.mxu0
    %v2613 = vadd.f32 0.0, %v2612
    %v2614 = vpop.f32.mrf.mxu0
    %2615 = vdwg.mxu0
    %2616 = vmatprep.subr.mxu0 0.0
    %2617 = vmatpush1.xpose.msra.mxu0 0.0
    %2618 = vmatprep.subr.mxu0 0.0
    %2619 = vmatpush1.xpose.msra.mxu0 0.0
    %2620 = vmatprep.subr.mxu0 0.0
    %2621 = vmatpush1.xpose.msra.mxu0 0.0
    %2622 = vmatprep.subr.mxu0 0.0
    %2623 = vmatpush1.xpose.msra.mxu0 0.0
    %2624 = vmatprep.subr.mxu0 0.0
    %2625 = vmatpush1.xpose.msra.mxu0 0.0
    %2626 = vmatprep.subr.mxu0 0.0
    %2627 = vmatpush1.xpose.msra.mxu0 0.0
    %2628 = vmatprep.subr.mxu0 0.0
    %2629 = vmatpush1.xpose.msra.mxu0 0.0
    %2630 = vmatprep.subr.mxu0 0.0
    %2631 = vmatpush1.xpose.msra.mxu0 0.0
    %2632 = vmatprep.subr.mxu0 0.0
    %2633 = vmatpush1.xpose.msra.mxu0 0.0
    %2634 = vmatprep.subr.mxu0 0.0
    %2635 = vmatpush1.xpose.msra.mxu0 0.0
    %2636 = vmatprep.subr.mxu0 0.0
    %2637 = vmatpush1.xpose.msra.mxu0 0.0
    %2638 = vmatprep.subr.mxu0 0.0
    %2639 = vmatpush1.xpose.msra.mxu0 0.0
    %2640 = vmatprep.subr.mxu0 0.0
    %2641 = vmatpush1.xpose.msra.mxu0 0.0
    %2642 = vmatprep.subr.mxu0 0.0
    %2643 = vmatpush1.xpose.msra.mxu0 0.0
    %2644 = vmatprep.subr.mxu0 0.0
    %2645 = vmatpush1.xpose.msra.mxu0 0.0
    %v2646 = vand.u32 %v2533, 4294901760
    %v2647 = vsub.f32 %v2533, %v2646
    %v2648 = vand.u32 %v2647, 4294901760
    %v2649 = vsub.f32 %v2647, %v2648
    %v2650 = vand.u32 %v2649, 4294901760
    %2651 = vmatprep.subr.mxu0 %v2650
    %v2652 = vand.u32 %v2532, 4294901760
    %v2653 = vsub.f32 %v2532, %v2652
    %v2654 = vand.u32 %v2653, 4294901760
    %v2655 = vsub.f32 %v2653, %v2654
    %v2656 = vand.u32 %v2655, 4294901760
    %2657 = vmatpush1.xpose.msra.mxu0 %v2656
    %2658 = vmatprep.subr.mxu0 0.0
    %2659 = vmatpush2.xpose.msra.mxu0 0.0
    %2660 = vmatprep.subr.mxu0 0.0
    %2661 = vmatpush2.xpose.msra.mxu0 0.0
    %2662 = vmatprep.subr.mxu0 0.0
    %2663 = vmatpush2.xpose.msra.mxu0 0.0
    %2664 = vmatprep.subr.mxu0 0.0
    %2665 = vmatpush2.xpose.msra.mxu0 0.0
    %2666 = vmatprep.subr.mxu0 0.0
    %2667 = vmatpush2.xpose.msra.mxu0 0.0
    %2668 = vmatprep.subr.mxu0 0.0
    %2669 = vmatpush2.xpose.msra.mxu0 0.0
    %2670 = vmatprep.subr.mxu0 0.0
    %2671 = vmatpush2.xpose.msra.mxu0 0.0
    %2672 = vmatprep.subr.mxu0 0.0
    %2673 = vmatpush2.xpose.msra.mxu0 0.0
    %2674 = vmatprep.subr.mxu0 0.0
    %2675 = vmatpush2.xpose.msra.mxu0 0.0
    %2676 = vmatprep.subr.mxu0 0.0
    %2677 = vmatpush2.xpose.msra.mxu0 0.0
    %2678 = vmatprep.subr.mxu0 0.0
    %2679 = vmatpush2.xpose.msra.mxu0 0.0
    %2680 = vmatprep.subr.mxu0 0.0
    %2681 = vmatpush2.xpose.msra.mxu0 0.0
    %2682 = vmatprep.subr.mxu0 0.0
    %2683 = vmatpush2.xpose.msra.mxu0 0.0
    %2684 = vmatprep.subr.mxu0 0.0
    %2685 = vmatpush2.xpose.msra.mxu0 0.0
    %2686 = vmatprep.subr.mxu0 0.0
    %2687 = vmatpush2.xpose.msra.mxu0 0.0
    %2688 = vmatprep.subr.mxu0 0.0
    %2689 = vmatpush2.xpose.msra.mxu0 0.0
    %v2690 = vand.u32 %v2531, 4294901760
    %2691 = vmatprep.mubr.f32.mxu0 %v2690
    %v2692 = vand.u32 %v2530, 4294901760
    %2693 = vmatmul.mubr.f32.gmra.mxu0 %v2692
    %v2694 = vpop.f32.mrf.mxu0
    %v2695 = vadd.f32 %v2613, %v2694
    %v2696 = vpop.f32.mrf.mxu0
    %2697 = vdwg.mxu0
    %2698 = vmatprep.subr.mxu0 0.0
    %2699 = vmatpush1.xpose.msra.mxu0 0.0
    %2700 = vmatprep.subr.mxu0 0.0
    %2701 = vmatpush1.xpose.msra.mxu0 0.0
    %2702 = vmatprep.subr.mxu0 0.0
    %2703 = vmatpush1.xpose.msra.mxu0 0.0
    %2704 = vmatprep.subr.mxu0 0.0
    %2705 = vmatpush1.xpose.msra.mxu0 0.0
    %2706 = vmatprep.subr.mxu0 0.0
    %2707 = vmatpush1.xpose.msra.mxu0 0.0
    %2708 = vmatprep.subr.mxu0 0.0
    %2709 = vmatpush1.xpose.msra.mxu0 0.0
    %2710 = vmatprep.subr.mxu0 0.0
    %2711 = vmatpush1.xpose.msra.mxu0 0.0
    %2712 = vmatprep.subr.mxu0 0.0
    %2713 = vmatpush1.xpose.msra.mxu0 0.0
    %2714 = vmatprep.subr.mxu0 0.0
    %2715 = vmatpush1.xpose.msra.mxu0 0.0
    %2716 = vmatprep.subr.mxu0 0.0
    %2717 = vmatpush1.xpose.msra.mxu0 0.0
    %2718 = vmatprep.subr.mxu0 0.0
    %2719 = vmatpush1.xpose.msra.mxu0 0.0
    %2720 = vmatprep.subr.mxu0 0.0
    %2721 = vmatpush1.xpose.msra.mxu0 0.0
    %2722 = vmatprep.subr.mxu0 0.0
    %2723 = vmatpush1.xpose.msra.mxu0 0.0
    %2724 = vmatprep.subr.mxu0 0.0
    %2725 = vmatpush1.xpose.msra.mxu0 0.0
    %2726 = vmatprep.subr.mxu0 0.0
    %2727 = vmatpush1.xpose.msra.mxu0 0.0
    %v2728 = vand.u32 %v2533, 4294901760
    %v2729 = vsub.f32 %v2533, %v2728
    %2730 = vmatprep.subr.mxu0 %v2729
    %v2731 = vand.u32 %v2532, 4294901760
    %v2732 = vsub.f32 %v2532, %v2731
    %2733 = vmatpush1.xpose.msra.mxu0 %v2732
    %2734 = vmatprep.subr.mxu0 0.0
    %2735 = vmatpush2.xpose.msra.mxu0 0.0
    %2736 = vmatprep.subr.mxu0 0.0
    %2737 = vmatpush2.xpose.msra.mxu0 0.0
    %2738 = vmatprep.subr.mxu0 0.0
    %2739 = vmatpush2.xpose.msra.mxu0 0.0
    %2740 = vmatprep.subr.mxu0 0.0
    %2741 = vmatpush2.xpose.msra.mxu0 0.0
    %2742 = vmatprep.subr.mxu0 0.0
    %2743 = vmatpush2.xpose.msra.mxu0 0.0
    %2744 = vmatprep.subr.mxu0 0.0
    %2745 = vmatpush2.xpose.msra.mxu0 0.0
    %2746 = vmatprep.subr.mxu0 0.0
    %2747 = vmatpush2.xpose.msra.mxu0 0.0
    %2748 = vmatprep.subr.mxu0 0.0
    %2749 = vmatpush2.xpose.msra.mxu0 0.0
    %2750 = vmatprep.subr.mxu0 0.0
    %2751 = vmatpush2.xpose.msra.mxu0 0.0
    %2752 = vmatprep.subr.mxu0 0.0
    %2753 = vmatpush2.xpose.msra.mxu0 0.0
    %2754 = vmatprep.subr.mxu0 0.0
    %2755 = vmatpush2.xpose.msra.mxu0 0.0
    %2756 = vmatprep.subr.mxu0 0.0
    %2757 = vmatpush2.xpose.msra.mxu0 0.0
    %2758 = vmatprep.subr.mxu0 0.0
    %2759 = vmatpush2.xpose.msra.mxu0 0.0
    %2760 = vmatprep.subr.mxu0 0.0
    %2761 = vmatpush2.xpose.msra.mxu0 0.0
    %2762 = vmatprep.subr.mxu0 0.0
    %2763 = vmatpush2.xpose.msra.mxu0 0.0
    %2764 = vmatprep.subr.mxu0 0.0
    %2765 = vmatpush2.xpose.msra.mxu0 0.0
    %v2766 = vand.u32 %v2531, 4294901760
    %v2767 = vsub.f32 %v2531, %v2766
    %2768 = vmatprep.mubr.f32.mxu0 %v2767
    %v2769 = vand.u32 %v2530, 4294901760
    %v2770 = vsub.f32 %v2530, %v2769
    %2771 = vmatmul.mubr.f32.gmra.mxu0 %v2770
    %v2772 = vpop.f32.mrf.mxu0
    %v2773 = vadd.f32 %v2695, %v2772
    %v2774 = vpop.f32.mrf.mxu0
    %2775 = vdwg.mxu0
    %2776 = vmatprep.subr.mxu0 0.0
    %2777 = vmatpush1.xpose.msra.mxu0 0.0
    %2778 = vmatprep.subr.mxu0 0.0
    %2779 = vmatpush1.xpose.msra.mxu0 0.0
    %2780 = vmatprep.subr.mxu0 0.0
    %2781 = vmatpush1.xpose.msra.mxu0 0.0
    %2782 = vmatprep.subr.mxu0 0.0
    %2783 = vmatpush1.xpose.msra.mxu0 0.0
    %2784 = vmatprep.subr.mxu0 0.0
    %2785 = vmatpush1.xpose.msra.mxu0 0.0
    %2786 = vmatprep.subr.mxu0 0.0
    %2787 = vmatpush1.xpose.msra.mxu0 0.0
    %2788 = vmatprep.subr.mxu0 0.0
    %2789 = vmatpush1.xpose.msra.mxu0 0.0
    %2790 = vmatprep.subr.mxu0 0.0
    %2791 = vmatpush1.xpose.msra.mxu0 0.0
    %2792 = vmatprep.subr.mxu0 0.0
    %2793 = vmatpush1.xpose.msra.mxu0 0.0
    %2794 = vmatprep.subr.mxu0 0.0
    %2795 = vmatpush1.xpose.msra.mxu0 0.0
    %2796 = vmatprep.subr.mxu0 0.0
    %2797 = vmatpush1.xpose.msra.mxu0 0.0
    %2798 = vmatprep.subr.mxu0 0.0
    %2799 = vmatpush1.xpose.msra.mxu0 0.0
    %2800 = vmatprep.subr.mxu0 0.0
    %2801 = vmatpush1.xpose.msra.mxu0 0.0
    %2802 = vmatprep.subr.mxu0 0.0
    %2803 = vmatpush1.xpose.msra.mxu0 0.0
    %2804 = vmatprep.subr.mxu0 0.0
    %2805 = vmatpush1.xpose.msra.mxu0 0.0
    %v2806 = vand.u32 %v2533, 4294901760
    %2807 = vmatprep.subr.mxu0 %v2806
    %v2808 = vand.u32 %v2532, 4294901760
    %2809 = vmatpush1.xpose.msra.mxu0 %v2808
    %2810 = vmatprep.subr.mxu0 0.0
    %2811 = vmatpush2.xpose.msra.mxu0 0.0
    %2812 = vmatprep.subr.mxu0 0.0
    %2813 = vmatpush2.xpose.msra.mxu0 0.0
    %2814 = vmatprep.subr.mxu0 0.0
    %2815 = vmatpush2.xpose.msra.mxu0 0.0
    %2816 = vmatprep.subr.mxu0 0.0
    %2817 = vmatpush2.xpose.msra.mxu0 0.0
    %2818 = vmatprep.subr.mxu0 0.0
    %2819 = vmatpush2.xpose.msra.mxu0 0.0
    %2820 = vmatprep.subr.mxu0 0.0
    %2821 = vmatpush2.xpose.msra.mxu0 0.0
    %2822 = vmatprep.subr.mxu0 0.0
    %2823 = vmatpush2.xpose.msra.mxu0 0.0
    %2824 = vmatprep.subr.mxu0 0.0
    %2825 = vmatpush2.xpose.msra.mxu0 0.0
    %2826 = vmatprep.subr.mxu0 0.0
    %2827 = vmatpush2.xpose.msra.mxu0 0.0
    %2828 = vmatprep.subr.mxu0 0.0
    %2829 = vmatpush2.xpose.msra.mxu0 0.0
    %2830 = vmatprep.subr.mxu0 0.0
    %2831 = vmatpush2.xpose.msra.mxu0 0.0
    %2832 = vmatprep.subr.mxu0 0.0
    %2833 = vmatpush2.xpose.msra.mxu0 0.0
    %2834 = vmatprep.subr.mxu0 0.0
    %2835 = vmatpush2.xpose.msra.mxu0 0.0
    %2836 = vmatprep.subr.mxu0 0.0
    %2837 = vmatpush2.xpose.msra.mxu0 0.0
    %2838 = vmatprep.subr.mxu0 0.0
    %2839 = vmatpush2.xpose.msra.mxu0 0.0
    %2840 = vmatprep.subr.mxu0 0.0
    %2841 = vmatpush2.xpose.msra.mxu0 0.0
    %v2842 = vand.u32 %v2531, 4294901760
    %v2843 = vsub.f32 %v2531, %v2842
    %v2844 = vand.u32 %v2843, 4294901760
    %2845 = vmatprep.mubr.f32.mxu0 %v2844
    %v2846 = vand.u32 %v2530, 4294901760
    %v2847 = vsub.f32 %v2530, %v2846
    %v2848 = vand.u32 %v2847, 4294901760
    %2849 = vmatmul.mubr.f32.gmra.mxu0 %v2848
    %v2850 = vpop.f32.mrf.mxu0
    %v2851 = vadd.f32 %v2773, %v2850
    %v2852 = vpop.f32.mrf.mxu0
    %2853 = vdwg.mxu0
    %2854 = vmatprep.subr.mxu0 0.0
    %2855 = vmatpush1.xpose.msra.mxu0 0.0
    %2856 = vmatprep.subr.mxu0 0.0
    %2857 = vmatpush1.xpose.msra.mxu0 0.0
    %2858 = vmatprep.subr.mxu0 0.0
    %2859 = vmatpush1.xpose.msra.mxu0 0.0
    %2860 = vmatprep.subr.mxu0 0.0
    %2861 = vmatpush1.xpose.msra.mxu0 0.0
    %2862 = vmatprep.subr.mxu0 0.0
    %2863 = vmatpush1.xpose.msra.mxu0 0.0
    %2864 = vmatprep.subr.mxu0 0.0
    %2865 = vmatpush1.xpose.msra.mxu0 0.0
    %2866 = vmatprep.subr.mxu0 0.0
    %2867 = vmatpush1.xpose.msra.mxu0 0.0
    %2868 = vmatprep.subr.mxu0 0.0
    %2869 = vmatpush1.xpose.msra.mxu0 0.0
    %2870 = vmatprep.subr.mxu0 0.0
    %2871 = vmatpush1.xpose.msra.mxu0 0.0
    %2872 = vmatprep.subr.mxu0 0.0
    %2873 = vmatpush1.xpose.msra.mxu0 0.0
    %2874 = vmatprep.subr.mxu0 0.0
    %2875 = vmatpush1.xpose.msra.mxu0 0.0
    %2876 = vmatprep.subr.mxu0 0.0
    %2877 = vmatpush1.xpose.msra.mxu0 0.0
    %2878 = vmatprep.subr.mxu0 0.0
    %2879 = vmatpush1.xpose.msra.mxu0 0.0
    %2880 = vmatprep.subr.mxu0 0.0
    %2881 = vmatpush1.xpose.msra.mxu0 0.0
    %2882 = vmatprep.subr.mxu0 0.0
    %2883 = vmatpush1.xpose.msra.mxu0 0.0
    %v2884 = vand.u32 %v2533, 4294901760
    %v2885 = vsub.f32 %v2533, %v2884
    %v2886 = vand.u32 %v2885, 4294901760
    %2887 = vmatprep.subr.mxu0 %v2886
    %v2888 = vand.u32 %v2532, 4294901760
    %v2889 = vsub.f32 %v2532, %v2888
    %v2890 = vand.u32 %v2889, 4294901760
    %2891 = vmatpush1.xpose.msra.mxu0 %v2890
    %2892 = vmatprep.subr.mxu0 0.0
    %2893 = vmatpush2.xpose.msra.mxu0 0.0
    %2894 = vmatprep.subr.mxu0 0.0
    %2895 = vmatpush2.xpose.msra.mxu0 0.0
    %2896 = vmatprep.subr.mxu0 0.0
    %2897 = vmatpush2.xpose.msra.mxu0 0.0
    %2898 = vmatprep.subr.mxu0 0.0
    %2899 = vmatpush2.xpose.msra.mxu0 0.0
    %2900 = vmatprep.subr.mxu0 0.0
    %2901 = vmatpush2.xpose.msra.mxu0 0.0
    %2902 = vmatprep.subr.mxu0 0.0
    %2903 = vmatpush2.xpose.msra.mxu0 0.0
    %2904 = vmatprep.subr.mxu0 0.0
    %2905 = vmatpush2.xpose.msra.mxu0 0.0
    %2906 = vmatprep.subr.mxu0 0.0
    %2907 = vmatpush2.xpose.msra.mxu0 0.0
    %2908 = vmatprep.subr.mxu0 0.0
    %2909 = vmatpush2.xpose.msra.mxu0 0.0
    %2910 = vmatprep.subr.mxu0 0.0
    %2911 = vmatpush2.xpose.msra.mxu0 0.0
    %2912 = vmatprep.subr.mxu0 0.0
    %2913 = vmatpush2.xpose.msra.mxu0 0.0
    %2914 = vmatprep.subr.mxu0 0.0
    %2915 = vmatpush2.xpose.msra.mxu0 0.0
    %2916 = vmatprep.subr.mxu0 0.0
    %2917 = vmatpush2.xpose.msra.mxu0 0.0
    %2918 = vmatprep.subr.mxu0 0.0
    %2919 = vmatpush2.xpose.msra.mxu0 0.0
    %2920 = vmatprep.subr.mxu0 0.0
    %2921 = vmatpush2.xpose.msra.mxu0 0.0
    %2922 = vmatprep.subr.mxu0 0.0
    %2923 = vmatpush2.xpose.msra.mxu0 0.0
    %v2924 = vand.u32 %v2531, 4294901760
    %2925 = vmatprep.mubr.f32.mxu0 %v2924
    %v2926 = vand.u32 %v2530, 4294901760
    %2927 = vmatmul.mubr.f32.gmra.mxu0 %v2926
    %v2928 = vpop.f32.mrf.mxu0
    %v2929 = vadd.f32 %v2851, %v2928
    %v2930 = vpop.f32.mrf.mxu0
    %2931 = vdwg.mxu0
    %2932 = vmatprep.subr.mxu0 0.0
    %2933 = vmatpush1.xpose.msra.mxu0 0.0
    %2934 = vmatprep.subr.mxu0 0.0
    %2935 = vmatpush1.xpose.msra.mxu0 0.0
    %2936 = vmatprep.subr.mxu0 0.0
    %2937 = vmatpush1.xpose.msra.mxu0 0.0
    %2938 = vmatprep.subr.mxu0 0.0
    %2939 = vmatpush1.xpose.msra.mxu0 0.0
    %2940 = vmatprep.subr.mxu0 0.0
    %2941 = vmatpush1.xpose.msra.mxu0 0.0
    %2942 = vmatprep.subr.mxu0 0.0
    %2943 = vmatpush1.xpose.msra.mxu0 0.0
    %2944 = vmatprep.subr.mxu0 0.0
    %2945 = vmatpush1.xpose.msra.mxu0 0.0
    %2946 = vmatprep.subr.mxu0 0.0
    %2947 = vmatpush1.xpose.msra.mxu0 0.0
    %2948 = vmatprep.subr.mxu0 0.0
    %2949 = vmatpush1.xpose.msra.mxu0 0.0
    %2950 = vmatprep.subr.mxu0 0.0
    %2951 = vmatpush1.xpose.msra.mxu0 0.0
    %2952 = vmatprep.subr.mxu0 0.0
    %2953 = vmatpush1.xpose.msra.mxu0 0.0
    %2954 = vmatprep.subr.mxu0 0.0
    %2955 = vmatpush1.xpose.msra.mxu0 0.0
    %2956 = vmatprep.subr.mxu0 0.0
    %2957 = vmatpush1.xpose.msra.mxu0 0.0
    %2958 = vmatprep.subr.mxu0 0.0
    %2959 = vmatpush1.xpose.msra.mxu0 0.0
    %2960 = vmatprep.subr.mxu0 0.0
    %2961 = vmatpush1.xpose.msra.mxu0 0.0
    %v2962 = vand.u32 %v2533, 4294901760
    %2963 = vmatprep.subr.mxu0 %v2962
    %v2964 = vand.u32 %v2532, 4294901760
    %2965 = vmatpush1.xpose.msra.mxu0 %v2964
    %2966 = vmatprep.subr.mxu0 0.0
    %2967 = vmatpush2.xpose.msra.mxu0 0.0
    %2968 = vmatprep.subr.mxu0 0.0
    %2969 = vmatpush2.xpose.msra.mxu0 0.0
    %2970 = vmatprep.subr.mxu0 0.0
    %2971 = vmatpush2.xpose.msra.mxu0 0.0
    %2972 = vmatprep.subr.mxu0 0.0
    %2973 = vmatpush2.xpose.msra.mxu0 0.0
    %2974 = vmatprep.subr.mxu0 0.0
    %2975 = vmatpush2.xpose.msra.mxu0 0.0
    %2976 = vmatprep.subr.mxu0 0.0
    %2977 = vmatpush2.xpose.msra.mxu0 0.0
    %2978 = vmatprep.subr.mxu0 0.0
    %2979 = vmatpush2.xpose.msra.mxu0 0.0
    %2980 = vmatprep.subr.mxu0 0.0
    %2981 = vmatpush2.xpose.msra.mxu0 0.0
    %2982 = vmatprep.subr.mxu0 0.0
    %2983 = vmatpush2.xpose.msra.mxu0 0.0
    %2984 = vmatprep.subr.mxu0 0.0
    %2985 = vmatpush2.xpose.msra.mxu0 0.0
    %2986 = vmatprep.subr.mxu0 0.0
    %2987 = vmatpush2.xpose.msra.mxu0 0.0
    %2988 = vmatprep.subr.mxu0 0.0
    %2989 = vmatpush2.xpose.msra.mxu0 0.0
    %2990 = vmatprep.subr.mxu0 0.0
    %2991 = vmatpush2.xpose.msra.mxu0 0.0
    %2992 = vmatprep.subr.mxu0 0.0
    %2993 = vmatpush2.xpose.msra.mxu0 0.0
    %2994 = vmatprep.subr.mxu0 0.0
    %2995 = vmatpush2.xpose.msra.mxu0 0.0
    %2996 = vmatprep.subr.mxu0 0.0
    %2997 = vmatpush2.xpose.msra.mxu0 0.0
    %v2998 = vand.u32 %v2531, 4294901760
    %2999 = vmatprep.mubr.f32.mxu0 %v2998
    %v3000 = vand.u32 %v2530, 4294901760
    %3001 = vmatmul.mubr.f32.gmra.mxu0 %v3000
    %v3002 = vpop.f32.mrf.mxu0
    %v3003 = vadd.f32 %v2929, %v3002
    %v3004 = vpop.f32.mrf.mxu0
    %3005 = vdwg.mxu0
    %v3006 = vmul.f32 %v3003, 2.0
    %v3007 = vsub.f32 2.0, %v3006
    %v3008 = vmax.f32 %v3007, 0.0
    %v3009 = vrsqrt.pop %v3008
    %v3010 = vmul.f32 %v3008, %v3009
    %vm3011 = vcmp.eq.f32.partialorder %v3008, inf
    %v3012 = vsel %vm3011, %v3008, %v3010
    %vm3013 = vcmp.eq.f32.partialorder %v3008, 0.0
    %v3014 = vand.u32 %v3008, 2147483648
    %v3015 = vsel %vm3013, %v3014, %v3012
    %v3016 = vlaneseq
    %v3017 = vshrl.u32 %v3016, 7
    %v3018 = vlaneseq
    %v3019 = vand.u32 %v3018, 127
    %vm3020 = vcmp.ge.s32.totalorder %v3017, 0
    %vm3021 = vcmp.lt.s32.totalorder %v3017, 4
    %vm3022 = vmand %vm3020, %vm3021
    %vm3023 = vcmp.ge.s32.totalorder %v3019, 0
    %vm3024 = vmand %vm3022, %vm3023
    %vm3025 = vcmp.lt.s32.totalorder %v3019, 4
    %vm3026 = vmand %vm3024, %vm3025
    %vm3027 = vcmp.ge.s32.totalorder %v3017, 4
    %vm3028 = vcmp.lt.s32.totalorder %v3017, 8
    %vm3029 = vmand %vm3027, %vm3028
    %vm3030 = vcmp.ge.s32.totalorder %v3019, 4
    %vm3031 = vmand %vm3029, %vm3030
    %vm3032 = vcmp.lt.s32.totalorder %v3019, 8
    %vm3033 = vmand %vm3031, %vm3032
    %vm3034 = vmor %vm3026, %vm3033
    %vm3035 = vcmp.eq.s32.totalorder %v3017, %v3019
    %v3036 = vsel %vm3034, 0.15, 0.0
    %v3037 = vsel %vm3035, 0.55, %v3036
    %v3038 = vmul.f32 %v3015, %v3037
    %vm3039 = vcmask 64512
    %v3040 = vsel %vm3039, %v3038, 0.0
    %3041 = vadd.xlane.f32.xlu0 %v3040
    %v3042 = vpop.xlane.xlu0 %3041
    %v3043 = vrot.slane %v3042, 4
    %v3044 = vadd.f32 %v3042, %v3043
    %v3045 = vrot.slane %v3044, 2
    %v3046 = vadd.f32 %v3044, %v3045
    %v3047 = vrot.slane %v3046, 1
    %v3048 = vadd.f32 %v3046, %v3047
    %s3049 = vtos %v3048
    %s3050 = smul.f32 %s3049, 0.125
    %s3051 = scalar_lea.smem [#allocation9], 0
    %3052 = sst [smem:[%s3051]] %s3050
    // Predicated region
    $region42: #{tpu_custom_call.1} parent=1 // pred_check
      _
    $region43: #{tpu_custom_call.1} parent=1 // pred_check_branch
      %3054 = sbr.rel (0) target = $region45
    $region44: #{tpu_custom_call.1} parent=1 // pred_region
      %s3056 = ssub.s32 16, 16
      %3057 = vsyncadd [#allocation6], %s3056
      %3060 = dma.smem_to_hbm [#allocation9], 16, %s8, [#allocation6]
    $region45: #{tpu_custom_call.1} parent=1 // pred_fallthru
      _
    // Predicated region
    $region46: #{tpu_custom_call.1} parent=1 // pred_check
      _
    $region47: #{tpu_custom_call.1} parent=1 // pred_check_branch
      %3062 = sbr.rel (0) target = $region49
    $region48: #{tpu_custom_call.1} parent=1 // pred_region
      %3063 = dma.done [#allocation6], 16
    $region49: #{tpu_custom_call.1} parent=1 // pred_fallthru
      _
    %3064 = sfence
    %3065 = vsyncpa [#allocation5], 1
    %3066 = vsyncpa [#allocation8], 1
    %3067 = vsyncpa [#allocation6], 1
  %3068 = vsyncmov [#allocation3]
  %s3069 = vpop.sfrf %3068
  %p3070 = scmp.eq.s32.totalorder %s3069, 0
  %p3071 = pneg %p3070
  %3073 = shalt.err (%p3071)

</llo_original>
